<compile_context>
chip_gen: v7x
topology: tpu7x:2x2x1
jax: 0.10.0
libtpu: 0.0.40
codegen_flags: <defaults>
</compile_context>

<pallas_src>
import functools

import jax
import jax.numpy as jnp
from jax.experimental import pallas as pl
from jax.experimental.pallas import tpu as pltpu


# ----------------------------------------------------------------------------
# Pallas kernels (pointwise path)
# ----------------------------------------------------------------------------
def _linear_t_kernel(x_ref, w_ref, b_ref, o_ref, *, act):
    # x_ref: (Bb, Cin, tS), w_ref: (Cout, Cin), b_ref: (Cout, 1)
    for i in range(x_ref.shape[0]):
        y = jnp.dot(w_ref[...], x_ref[i], preferred_element_type=jnp.float32)
        y = y + b_ref[...]
        if act:
            y = jnp.maximum(y, 0.0)
        o_ref[i] = y.astype(o_ref.dtype)


def _linear_t_residual_kernel(x_ref, w_ref, b_ref, r_ref, o_ref, *, act):
    # Fused 1x1 skip conv + spectral residual add + activation.
    for i in range(x_ref.shape[0]):
        y = jnp.dot(w_ref[...], x_ref[i], preferred_element_type=jnp.float32)
        y = y + b_ref[...] + r_ref[i].astype(jnp.float32)
        if act:
            y = jnp.maximum(y, 0.0)
        o_ref[i] = y.astype(o_ref.dtype)


def _project_kernel(x_ref, w1_ref, b1_ref, w2_ref, b2_ref, o_ref):
    # Fused projection head: y = W2_t @ relu(W1_t @ x + b1) + b2
    for i in range(x_ref.shape[0]):
        h = jnp.dot(w1_ref[...], x_ref[i], preferred_element_type=jnp.float32)
        h = jnp.maximum(h + b1_ref[...], 0.0)
        y = jnp.dot(w2_ref[...], h.astype(w2_ref.dtype),
                    preferred_element_type=jnp.float32)
        o_ref[i] = (y + b2_ref[...]).astype(o_ref.dtype)


# ----------------------------------------------------------------------------
# Tiling plan
# ----------------------------------------------------------------------------
_VMEM_BUDGET = 12 * 1024 * 1024       # pipeline buffers per step (all gens safe)
_VMEM_LIMIT = 32 * 1024 * 1024        # raise v5e's 16 MiB scoped default


def _block_plan(B, S, per_lane_bytes):
    """Pick (batch block Bb, spatial tile tS).

    Goals (perf review):
      * move ~MBs of HBM data per grid step so the ~0.35us/step pipeline cost
        is amortized (previously 96 KB/step -> step-overhead-bound),
      * keep the double-buffered pipeline inside ~12 MiB of VMEM (safe on
        v5e's 16 MiB scoped default and v7x's 64 MiB physical VMEM),
      * keep >= 2 grid steps when possible so v7x's two TensorCores get work.
    """
    max_lanes = max(256, _VMEM_BUDGET // (2 * per_lane_bytes))

    if S <= max_lanes:
        tS = S
    else:
        cap = (min(S, max_lanes) // 128) * 128
        tS = next((d for d in range(cap, 127, -128) if S % d == 0), S)
        # TODO(synk): masked tail handling when S has no multiple-of-128 divisor.

    n_s = S // tS
    cands = [c for c in range(B, 0, -1)
             if B % c == 0 and c * tS <= max_lanes] or [1]
    # Deepest batch fold that still leaves >= 2 grid steps, else deepest fold.
    Bb = next((c for c in cands if (B // c) * n_s >= 2), cands[0])

    # If everything collapsed to a single step, split the spatial axis so both
    # v7x TensorCores get work (keeps lane dim a multiple of 128).
    if (B // Bb) * (S // tS) == 1 and tS % 256 == 0:
        tS //= 2
    return Bb, tS


# ----------------------------------------------------------------------------
# Pallas wrappers
# ----------------------------------------------------------------------------
def pointwise_linear(x, wt, b, residual=None, act=False):
    """y[b] = act(wt @ x[b] + b [+ residual[b]]).

    x: (B, Cin, S); wt: (Cout, Cin); b: (Cout, 1); residual: (B, Cout, S)|None.
    Spatial axis S on lanes -> unmasked, full-width stores.
    """
    B, Cin, S = x.shape
    Cout = wt.shape[0]
    wt = wt.astype(x.dtype)
    b = b.astype(jnp.float32)
    itemsize = jnp.dtype(x.dtype).itemsize

    per_lane = (Cin + Cout + (Cout if residual is not None else 0)) * itemsize
    Bb, tS = _block_plan(B, S, per_lane)
    grid = (B // Bb, S // tS)

    x_spec = pl.BlockSpec((Bb, Cin, tS), lambda bi, si: (bi, 0, si))
    w_spec = pl.BlockSpec((Cout, Cin), lambda bi, si: (0, 0))
    b_spec = pl.BlockSpec((Cout, 1), lambda bi, si: (0, 0))
    o_spec = pl.BlockSpec((Bb, Cout, tS), lambda bi, si: (bi, 0, si))

    bytes_accessed = itemsize * (B * Cin * S + B * Cout * S
                                 + (B * Cout * S if residual is not None else 0)
                                 + Cout * Cin) + 4 * Cout
    flops = 2 * B * Cout * Cin * S + 2 * B * Cout * S

    if residual is None:
        kernel = functools.partial(_linear_t_kernel, act=act)
        in_specs = [x_spec, w_spec, b_spec]
        args = (x, wt, b)
    else:
        kernel = functools.partial(_linear_t_residual_kernel, act=act)
        in_specs = [x_spec, w_spec, b_spec, o_spec]
        args = (x, wt, b, residual.astype(x.dtype))

    return pl.pallas_call(
        kernel,
        out_shape=jax.ShapeDtypeStruct((B, Cout, S), x.dtype),
        grid=grid,
        in_specs=in_specs,
        out_specs=o_spec,
        compiler_params=pltpu.CompilerParams(
            dimension_semantics=("parallel", "parallel"),
            vmem_limit_bytes=_VMEM_LIMIT),
        cost_estimate=pl.CostEstimate(
            flops=flops, transcendentals=0, bytes_accessed=bytes_accessed),
    )(*args)


def project(x, w1t, b1, w2t, b2, out_dtype=jnp.float32):
    """Fused projection head: W2_t @ relu(W1_t @ x + b1) + b2."""
    B, C5, S = x.shape
    C6 = w1t.shape[0]
    C7 = w2t.shape[0]
    w1t = w1t.astype(x.dtype)
    w2t = w2t.astype(x.dtype)
    b1 = b1.astype(jnp.float32)
    b2 = b2.astype(jnp.float32)
    itemsize = jnp.dtype(x.dtype).itemsize
    out_itemsize = jnp.dtype(out_dtype).itemsize

    # Include the in-kernel f32 intermediate (C6, tS) in the per-lane budget.
    per_lane = C5 * itemsize + C7 * out_itemsize + C6 * 4
    Bb, tS = _block_plan(B, S, per_lane)
    grid = (B // Bb, S // tS)

    bytes_accessed = (itemsize * (B * C5 * S + C6 * C5 + C7 * C6)
                      + out_itemsize * B * C7 * S + 4 * (C6 + C7))
    flops = 2 * B * S * (C6 * C5 + C7 * C6) + 2 * B * S * (C6 + C7)

    return pl.pallas_call(
        _project_kernel,
        out_shape=jax.ShapeDtypeStruct((B, C7, S), out_dtype),
        grid=grid,
        in_specs=[
            pl.BlockSpec((Bb, C5, tS), lambda bi, si: (bi, 0, si)),
            pl.BlockSpec((C6, C5), lambda bi, si: (0, 0)),
            pl.BlockSpec((C6, 1), lambda bi, si: (0, 0)),
            pl.BlockSpec((C7, C6), lambda bi, si: (0, 0)),
            pl.BlockSpec((C7, 1), lambda bi, si: (0, 0)),
        ],
        out_specs=pl.BlockSpec((Bb, C7, tS), lambda bi, si: (bi, 0, si)),
        compiler_params=pltpu.CompilerParams(
            dimension_semantics=("parallel", "parallel"),
            vmem_limit_bytes=_VMEM_LIMIT),
        cost_estimate=pl.CostEstimate(
            flops=flops, transcendentals=0, bytes_accessed=bytes_accessed),
    )(x, w1t, b1, w2t, b2)


# ----------------------------------------------------------------------------
# FNO forward
# ----------------------------------------------------------------------------
def fourier_kernel_layer(x, params, modes, act):
    """One FourierKernel layer: activate(spectral_conv(x) + conv1x1(x)).

    x: (B, Cin, H, W) -> (B, Cout, H, W)
    """
    B, Cin, H, W = x.shape
    m1, m2 = modes
    Cout = params["skip_wt"].shape[0]
    Wf = W // 2 + 1

    # TODO(synk): rfft2/irfft2 have no Pallas TPU primitive; they (and the tiny
    # per-mode complex contraction, which fuses with the corner slicing and
    # zero-padding) stay in XLA.  At production mode counts a lane-dense
    # Pallas spectral kernel could be revisited.
    x_ft = jnp.fft.rfft2(x.astype(jnp.float32), axes=(-2, -1))   # (B,Cin,H,Wf)
    top = x_ft[:, :, :m1, :m2]
    bot = x_ft[:, :, H - m1:, :m2]
    o_top = jnp.einsum("bcxy,xyco->boxy", top, params["spec_w1"])
    o_bot = jnp.einsum("bcxy,xyco->boxy", bot, params["spec_w2"])
    out_ft = jnp.zeros((B, Cout, H, Wf), jnp.complex64)
    out_ft = out_ft.at[:, :, :m1, :m2].set(o_top)
    out_ft = out_ft.at[:, :, H - m1:, :m2].set(o_bot)
    spec = jnp.fft.irfft2(out_ft, s=(H, W), axes=(-2, -1))       # (B,Cout,H,W)

    # 1x1 skip conv + spectral residual + activation fused in one Pallas call.
    y = pointwise_linear(
        x.reshape(B, Cin, H * W),
        params["skip_wt"], params["skip_b"],
        residual=spec.reshape(B, Cout, H * W),
        act=act,
    )
    return y.reshape(B, Cout, H, W)


def fno_forward(x_nchw, params, modes, compute_dtype=jnp.bfloat16):
    # NCHW in / NCHW out; spatial axis kept on lanes, no layout permutes.
    # Intermediate activations in bf16 (f32 accumulation); final output f32.
    B, C0, H, W = x_nchw.shape
    S = H * W

    x = pointwise_linear(x_nchw.reshape(B, C0, S).astype(compute_dtype),
                         params["lift_wt"], params["lift_b"], act=False)
    x = x.reshape(B, -1, H, W)

    for li, layer in enumerate(params["layers"]):
        x = fourier_kernel_layer(x, layer, modes, act=(li < 3))  # last: Identity

    C5 = x.shape[1]
    out = project(x.reshape(B, C5, S),
                  params["proj1_wt"], params["proj1_b"],
                  params["proj2_wt"], params["proj2_b"],
                  out_dtype=jnp.float32)
    return out.reshape(B, -1, H, W)


# ----------------------------------------------------------------------------
# Deterministic parameter init (shapes follow the module's __init__)
# ----------------------------------------------------------------------------
def init_params(key, channels, modes):
    m1, m2 = modes
    keys = iter(jax.random.split(key, 48))

    def linear_t(cin, cout):
        k1, k2 = next(keys), next(keys)
        bound = 1.0 / float(cin) ** 0.5
        wt = jax.random.uniform(k1, (cout, cin), jnp.float32, -bound, bound)
        b = jax.random.uniform(k2, (cout, 1), jnp.float32, -bound, bound)
        return wt, b

    def spectral(cin, cout):
        scale = 1.0 / (cin * cout)
        wr = scale * jax.random.uniform(next(keys), (m1, m2, cin, cout), jnp.float32)
        wi = scale * jax.random.uniform(next(keys), (m1, m2, cin, cout), jnp.float32)
        return (wr + 1j * wi).astype(jnp.complex64)

    params = {}
    params["lift_wt"], params["lift_b"] = linear_t(channels[0], channels[1])

    layers = []
    for li in range(4):
        cin, cout = channels[1 + li], channels[2 + li]
        layer = {
            "spec_w1": spectral(cin, cout),   # low-frequency rows
            "spec_w2": spectral(cin, cout),   # high-frequency (wrapped) rows
        }
        layer["skip_wt"], layer["skip_b"] = linear_t(cin, cout)
        layers.append(layer)
    params["layers"] = layers

    params["proj1_wt"], params["proj1_b"] = linear_t(channels[5], channels[6])
    params["proj2_wt"], params["proj2_b"] = linear_t(channels[6], channels[7])
    return params


# ----------------------------------------------------------------------------
if __name__ == "__main__":
    channels = (4, 16, 16, 16, 16, 16, 32, 4)  # (c0 .. c7)
    modes = (4, 4)
    B, H, W = 2, 16, 16

    key = jax.random.PRNGKey(0)
    kx, kp = jax.random.split(key)
    x = jax.random.normal(kx, (B, channels[0], H, W), jnp.float32)
    params = init_params(kp, channels, modes)

    fwd = jax.jit(functools.partial(fno_forward, modes=modes))
    out = jax.block_until_ready(fwd(x, params))

    assert out.shape == (B, channels[-1], H, W), out.shape
    assert out.dtype == jnp.float32, out.dtype
    assert bool(jnp.all(jnp.isfinite(out)))
    print("KERNEL_OK")
</pallas_src>

<mosaic_0001>
module attributes {stable_mosaic.version = 11 : i64} {
  func.func @_linear_t_kernel(%arg0: i32, %arg1: i32, %arg2: memref<1x4x256xbf16, #tpu.memory_space<vmem>>, %arg3: memref<16x4xbf16, #tpu.memory_space<vmem>>, %arg4: memref<16x1xf32, #tpu.memory_space<vmem>>, %arg5: memref<1x16x256xbf16, #tpu.memory_space<vmem>>) attributes {dimension_semantics = [#tpu.dimension_semantics<parallel>, #tpu.dimension_semantics<parallel>], iteration_bounds = array<i64: 2, 1>, scalar_prefetch = 0 : i64, scratch_operands = 0 : i64, tpu.core_type = #tpu.core_type<tc>, window_params = [{transform_indices = @transform_0, window_bounds = array<i64: 1, 4, 256>}, {pipeline_mode = #tpu.pipeline_mode<synchronous>, transform_indices = @transform_1, window_bounds = array<i64: 16, 4>}, {pipeline_mode = #tpu.pipeline_mode<synchronous>, transform_indices = @transform_2, window_bounds = array<i64: 16, 1>}, {transform_indices = @transform_3, window_bounds = array<i64: 1, 16, 256>}]} {
    %c0 = arith.constant 0 : index
    %c0_0 = arith.constant 0 : index
    %0 = vector.load %arg3[%c0, %c0_0] : memref<16x4xbf16, #tpu.memory_space<vmem>>, vector<16x4xbf16>
    %c0_1 = arith.constant 0 : index
    %c0_2 = arith.constant 0 : index
    %c0_3 = arith.constant 0 : index
    %1 = vector.load %arg2[%c0_1, %c0_2, %c0_3] : memref<1x4x256xbf16, #tpu.memory_space<vmem>>, vector<1x4x256xbf16>
    %2 = vector.shape_cast %1 : vector<1x4x256xbf16> to vector<4x256xbf16>
    %cst = arith.constant dense<0.000000e+00> : vector<16x256xf32>
    %3 = tpu.matmul %0, %2, %cst {dimension_numbers = #tpu.dot_dimension_numbers<[1], [0], [0], [1], [0, 0, 1, 1], [], []>} : vector<16x4xbf16>, vector<4x256xbf16>, vector<16x256xf32> -> vector<16x256xf32>
    %c0_4 = arith.constant 0 : index
    %c0_5 = arith.constant 0 : index
    %4 = vector.load %arg4[%c0_4, %c0_5] : memref<16x1xf32, #tpu.memory_space<vmem>>, vector<16x1xf32>
    %5 = vector.broadcast %4 : vector<16x1xf32> to vector<16x256xf32>
    %6 = arith.addf %3, %5 : vector<16x256xf32>
    %7 = arith.truncf %6 : vector<16x256xf32> to vector<16x256xbf16>
    %c0_6 = arith.constant 0 : index
    %c0_7 = arith.constant 0 : index
    %c0_8 = arith.constant 0 : index
    %8 = vector.load %arg5[%c0_6, %c0_7, %c0_8] : memref<1x16x256xbf16, #tpu.memory_space<vmem>>, vector<1x16x256xbf16>
    %9 = vector.shape_cast %8 : vector<1x16x256xbf16> to vector<16x256xbf16>
    %10 = vector.shape_cast %7 : vector<16x256xbf16> to vector<1x16x256xbf16>
    tpu.vector_store %arg5[%c0_6, %c0_7, %c0_8], %10 {strides = array<i32>} : memref<1x16x256xbf16, #tpu.memory_space<vmem>>, vector<1x16x256xbf16>,
    return
  }
  func.func @transform_0(%arg0: i32, %arg1: i32) -> (i32, i32, i32) {
    %c0_i32 = arith.constant 0 : i32
    %c0_i32_0 = arith.constant 0 : i32
    return %arg0, %c0_i32, %arg1 : i32, i32, i32
  }
  func.func @transform_1(%arg0: i32, %arg1: i32) -> (i32, i32) {
    %c0_i32 = arith.constant 0 : i32
    %c0_i32_0 = arith.constant 0 : i32
    %c0_i32_1 = arith.constant 0 : i32
    return %c0_i32, %c0_i32_0 : i32, i32
  }
  func.func @transform_2(%arg0: i32, %arg1: i32) -> (i32, i32) {
    %c0_i32 = arith.constant 0 : i32
    %c0_i32_0 = arith.constant 0 : i32
    %c0_i32_1 = arith.constant 0 : i32
    return %c0_i32, %c0_i32_0 : i32, i32
  }
  func.func @transform_3(%arg0: i32, %arg1: i32) -> (i32, i32, i32) {
    %c0_i32 = arith.constant 0 : i32
    %c0_i32_0 = arith.constant 0 : i32
    return %arg0, %c0_i32, %arg1 : i32, i32, i32
  }
}

module attributes {stable_mosaic.version = 11 : i64} {
  func.func @_linear_t_residual_kernel(%arg0: i32, %arg1: i32, %arg2: memref<1x16x256xbf16, #tpu.memory_space<vmem>>, %arg3: memref<16x16xbf16, #tpu.memory_space<vmem>>, %arg4: memref<16x1xf32, #tpu.memory_space<vmem>>, %arg5: memref<1x16x256xbf16, #tpu.memory_space<vmem>>, %arg6: memref<1x16x256xbf16, #tpu.memory_space<vmem>>) attributes {dimension_semantics = [#tpu.dimension_semantics<parallel>, #tpu.dimension_semantics<parallel>], iteration_bounds = array<i64: 2, 1>, scalar_prefetch = 0 : i64, scratch_operands = 0 : i64, tpu.core_type = #tpu.core_type<tc>, window_params = [{transform_indices = @transform_0, window_bounds = array<i64: 1, 16, 256>}, {pipeline_mode = #tpu.pipeline_mode<synchronous>, transform_indices = @transform_1, window_bounds = array<i64: 16, 16>}, {pipeline_mode = #tpu.pipeline_mode<synchronous>, transform_indices = @transform_2, window_bounds = array<i64: 16, 1>}, {transform_indices = @transform_3, window_bounds = array<i64: 1, 16, 256>}, {transform_indices = @transform_4, window_bounds = array<i64: 1, 16, 256>}]} {
    %c0 = arith.constant 0 : index
    %c0_0 = arith.constant 0 : index
    %0 = vector.load %arg3[%c0, %c0_0] : memref<16x16xbf16, #tpu.memory_space<vmem>>, vector<16x16xbf16>
    %c0_1 = arith.constant 0 : index
    %c0_2 = arith.constant 0 : index
    %c0_3 = arith.constant 0 : index
    %1 = vector.load %arg2[%c0_1, %c0_2, %c0_3] : memref<1x16x256xbf16, #tpu.memory_space<vmem>>, vector<1x16x256xbf16>
    %2 = vector.shape_cast %1 : vector<1x16x256xbf16> to vector<16x256xbf16>
    %cst = arith.constant dense<0.000000e+00> : vector<16x256xf32>
    %3 = tpu.matmul %0, %2, %cst {dimension_numbers = #tpu.dot_dimension_numbers<[1], [0], [0], [1], [0, 0, 1, 1], [], []>} : vector<16x16xbf16>, vector<16x256xbf16>, vector<16x256xf32> -> vector<16x256xf32>
    %c0_4 = arith.constant 0 : index
    %c0_5 = arith.constant 0 : index
    %4 = vector.load %arg4[%c0_4, %c0_5] : memref<16x1xf32, #tpu.memory_space<vmem>>, vector<16x1xf32>
    %5 = vector.broadcast %4 : vector<16x1xf32> to vector<16x256xf32>
    %6 = arith.addf %3, %5 : vector<16x256xf32>
    %c0_6 = arith.constant 0 : index
    %c0_7 = arith.constant 0 : index
    %c0_8 = arith.constant 0 : index
    %7 = vector.load %arg5[%c0_6, %c0_7, %c0_8] : memref<1x16x256xbf16, #tpu.memory_space<vmem>>, vector<1x16x256xbf16>
    %8 = vector.shape_cast %7 : vector<1x16x256xbf16> to vector<16x256xbf16>
    %9 = arith.extf %8 : vector<16x256xbf16> to vector<16x256xf32>
    %10 = arith.addf %6, %9 : vector<16x256xf32>
    %cst_9 = arith.constant 0.000000e+00 : f32
    %11 = vector.broadcast %cst_9 : f32 to vector<16x256xf32>
    %12 = arith.maximumf %10, %11 : vector<16x256xf32>
    %13 = arith.truncf %12 : vector<16x256xf32> to vector<16x256xbf16>
    %c0_10 = arith.constant 0 : index
    %c0_11 = arith.constant 0 : index
    %c0_12 = arith.constant 0 : index
    %14 = vector.load %arg6[%c0_10, %c0_11, %c0_12] : memref<1x16x256xbf16, #tpu.memory_space<vmem>>, vector<1x16x256xbf16>
    %15 = vector.shape_cast %14 : vector<1x16x256xbf16> to vector<16x256xbf16>
    %16 = vector.shape_cast %13 : vector<16x256xbf16> to vector<1x16x256xbf16>
    tpu.vector_store %arg6[%c0_10, %c0_11, %c0_12], %16 {strides = array<i32>} : memref<1x16x256xbf16, #tpu.memory_space<vmem>>, vector<1x16x256xbf16>,
    return
  }
  func.func @transform_0(%arg0: i32, %arg1: i32) -> (i32, i32, i32) {
    %c0_i32 = arith.constant 0 : i32
    %c0_i32_0 = arith.constant 0 : i32
    return %arg0, %c0_i32, %arg1 : i32, i32, i32
  }
  func.func @transform_1(%arg0: i32, %arg1: i32) -> (i32, i32) {
    %c0_i32 = arith.constant 0 : i32
    %c0_i32_0 = arith.constant 0 : i32
    %c0_i32_1 = arith.constant 0 : i32
    return %c0_i32, %c0_i32_0 : i32, i32
  }
  func.func @transform_2(%arg0: i32, %arg1: i32) -> (i32, i32) {
    %c0_i32 = arith.constant 0 : i32
    %c0_i32_0 = arith.constant 0 : i32
    %c0_i32_1 = arith.constant 0 : i32
    return %c0_i32, %c0_i32_0 : i32, i32
  }
  func.func @transform_3(%arg0: i32, %arg1: i32) -> (i32, i32, i32) {
    %c0_i32 = arith.constant 0 : i32
    %c0_i32_0 = arith.constant 0 : i32
    return %arg0, %c0_i32, %arg1 : i32, i32, i32
  }
  func.func @transform_4(%arg0: i32, %arg1: i32) -> (i32, i32, i32) {
    %c0_i32 = arith.constant 0 : i32
    %c0_i32_0 = arith.constant 0 : i32
    return %arg0, %c0_i32, %arg1 : i32, i32, i32
  }
}

module attributes {stable_mosaic.version = 11 : i64} {
  func.func @_linear_t_residual_kernel(%arg0: i32, %arg1: i32, %arg2: memref<1x16x256xbf16, #tpu.memory_space<vmem>>, %arg3: memref<16x16xbf16, #tpu.memory_space<vmem>>, %arg4: memref<16x1xf32, #tpu.memory_space<vmem>>, %arg5: memref<1x16x256xbf16, #tpu.memory_space<vmem>>, %arg6: memref<1x16x256xbf16, #tpu.memory_space<vmem>>) attributes {dimension_semantics = [#tpu.dimension_semantics<parallel>, #tpu.dimension_semantics<parallel>], iteration_bounds = array<i64: 2, 1>, scalar_prefetch = 0 : i64, scratch_operands = 0 : i64, tpu.core_type = #tpu.core_type<tc>, window_params = [{transform_indices = @transform_0, window_bounds = array<i64: 1, 16, 256>}, {pipeline_mode = #tpu.pipeline_mode<synchronous>, transform_indices = @transform_1, window_bounds = array<i64: 16, 16>}, {pipeline_mode = #tpu.pipeline_mode<synchronous>, transform_indices = @transform_2, window_bounds = array<i64: 16, 1>}, {transform_indices = @transform_3, window_bounds = array<i64: 1, 16, 256>}, {transform_indices = @transform_4, window_bounds = array<i64: 1, 16, 256>}]} {
    %c0 = arith.constant 0 : index
    %c0_0 = arith.constant 0 : index
    %0 = vector.load %arg3[%c0, %c0_0] : memref<16x16xbf16, #tpu.memory_space<vmem>>, vector<16x16xbf16>
    %c0_1 = arith.constant 0 : index
    %c0_2 = arith.constant 0 : index
    %c0_3 = arith.constant 0 : index
    %1 = vector.load %arg2[%c0_1, %c0_2, %c0_3] : memref<1x16x256xbf16, #tpu.memory_space<vmem>>, vector<1x16x256xbf16>
    %2 = vector.shape_cast %1 : vector<1x16x256xbf16> to vector<16x256xbf16>
    %cst = arith.constant dense<0.000000e+00> : vector<16x256xf32>
    %3 = tpu.matmul %0, %2, %cst {dimension_numbers = #tpu.dot_dimension_numbers<[1], [0], [0], [1], [0, 0, 1, 1], [], []>} : vector<16x16xbf16>, vector<16x256xbf16>, vector<16x256xf32> -> vector<16x256xf32>
    %c0_4 = arith.constant 0 : index
    %c0_5 = arith.constant 0 : index
    %4 = vector.load %arg4[%c0_4, %c0_5] : memref<16x1xf32, #tpu.memory_space<vmem>>, vector<16x1xf32>
    %5 = vector.broadcast %4 : vector<16x1xf32> to vector<16x256xf32>
    %6 = arith.addf %3, %5 : vector<16x256xf32>
    %c0_6 = arith.constant 0 : index
    %c0_7 = arith.constant 0 : index
    %c0_8 = arith.constant 0 : index
    %7 = vector.load %arg5[%c0_6, %c0_7, %c0_8] : memref<1x16x256xbf16, #tpu.memory_space<vmem>>, vector<1x16x256xbf16>
    %8 = vector.shape_cast %7 : vector<1x16x256xbf16> to vector<16x256xbf16>
    %9 = arith.extf %8 : vector<16x256xbf16> to vector<16x256xf32>
    %10 = arith.addf %6, %9 : vector<16x256xf32>
    %11 = arith.truncf %10 : vector<16x256xf32> to vector<16x256xbf16>
    %c0_9 = arith.constant 0 : index
    %c0_10 = arith.constant 0 : index
    %c0_11 = arith.constant 0 : index
    %12 = vector.load %arg6[%c0_9, %c0_10, %c0_11] : memref<1x16x256xbf16, #tpu.memory_space<vmem>>, vector<1x16x256xbf16>
    %13 = vector.shape_cast %12 : vector<1x16x256xbf16> to vector<16x256xbf16>
    %14 = vector.shape_cast %11 : vector<16x256xbf16> to vector<1x16x256xbf16>
    tpu.vector_store %arg6[%c0_9, %c0_10, %c0_11], %14 {strides = array<i32>} : memref<1x16x256xbf16, #tpu.memory_space<vmem>>, vector<1x16x256xbf16>,
    return
  }
  func.func @transform_0(%arg0: i32, %arg1: i32) -> (i32, i32, i32) {
    %c0_i32 = arith.constant 0 : i32
    %c0_i32_0 = arith.constant 0 : i32
    return %arg0, %c0_i32, %arg1 : i32, i32, i32
  }
  func.func @transform_1(%arg0: i32, %arg1: i32) -> (i32, i32) {
    %c0_i32 = arith.constant 0 : i32
    %c0_i32_0 = arith.constant 0 : i32
    %c0_i32_1 = arith.constant 0 : i32
    return %c0_i32, %c0_i32_0 : i32, i32
  }
  func.func @transform_2(%arg0: i32, %arg1: i32) -> (i32, i32) {
    %c0_i32 = arith.constant 0 : i32
    %c0_i32_0 = arith.constant 0 : i32
    %c0_i32_1 = arith.constant 0 : i32
    return %c0_i32, %c0_i32_0 : i32, i32
  }
  func.func @transform_3(%arg0: i32, %arg1: i32) -> (i32, i32, i32) {
    %c0_i32 = arith.constant 0 : i32
    %c0_i32_0 = arith.constant 0 : i32
    return %arg0, %c0_i32, %arg1 : i32, i32, i32
  }
  func.func @transform_4(%arg0: i32, %arg1: i32) -> (i32, i32, i32) {
    %c0_i32 = arith.constant 0 : i32
    %c0_i32_0 = arith.constant 0 : i32
    return %arg0, %c0_i32, %arg1 : i32, i32, i32
  }
}

module attributes {stable_mosaic.version = 11 : i64} {
  func.func @_project_kernel(%arg0: i32, %arg1: i32, %arg2: memref<1x16x256xbf16, #tpu.memory_space<vmem>>, %arg3: memref<32x16xbf16, #tpu.memory_space<vmem>>, %arg4: memref<32x1xf32, #tpu.memory_space<vmem>>, %arg5: memref<4x32xbf16, #tpu.memory_space<vmem>>, %arg6: memref<4x1xf32, #tpu.memory_space<vmem>>, %arg7: memref<1x4x256xf32, #tpu.memory_space<vmem>>) attributes {dimension_semantics = [#tpu.dimension_semantics<parallel>, #tpu.dimension_semantics<parallel>], iteration_bounds = array<i64: 2, 1>, scalar_prefetch = 0 : i64, scratch_operands = 0 : i64, tpu.core_type = #tpu.core_type<tc>, window_params = [{transform_indices = @transform_0, window_bounds = array<i64: 1, 16, 256>}, {pipeline_mode = #tpu.pipeline_mode<synchronous>, transform_indices = @transform_1, window_bounds = array<i64: 32, 16>}, {pipeline_mode = #tpu.pipeline_mode<synchronous>, transform_indices = @transform_2, window_bounds = array<i64: 32, 1>}, {pipeline_mode = #tpu.pipeline_mode<synchronous>, transform_indices = @transform_3, window_bounds = array<i64: 4, 32>}, {pipeline_mode = #tpu.pipeline_mode<synchronous>, transform_indices = @transform_4, window_bounds = array<i64: 4, 1>}, {transform_indices = @transform_5, window_bounds = array<i64: 1, 4, 256>}]} {
    %c0 = arith.constant 0 : index
    %c0_0 = arith.constant 0 : index
    %0 = vector.load %arg3[%c0, %c0_0] : memref<32x16xbf16, #tpu.memory_space<vmem>>, vector<32x16xbf16>
    %c0_1 = arith.constant 0 : index
    %c0_2 = arith.constant 0 : index
    %c0_3 = arith.constant 0 : index
    %1 = vector.load %arg2[%c0_1, %c0_2, %c0_3] : memref<1x16x256xbf16, #tpu.memory_space<vmem>>, vector<1x16x256xbf16>
    %2 = vector.shape_cast %1 : vector<1x16x256xbf16> to vector<16x256xbf16>
    %cst = arith.constant dense<0.000000e+00> : vector<32x256xf32>
    %3 = tpu.matmul %0, %2, %cst {dimension_numbers = #tpu.dot_dimension_numbers<[1], [0], [0], [1], [0, 0, 1, 1], [], []>} : vector<32x16xbf16>, vector<16x256xbf16>, vector<32x256xf32> -> vector<32x256xf32>
    %c0_4 = arith.constant 0 : index
    %c0_5 = arith.constant 0 : index
    %4 = vector.load %arg4[%c0_4, %c0_5] : memref<32x1xf32, #tpu.memory_space<vmem>>, vector<32x1xf32>
    %5 = vector.broadcast %4 : vector<32x1xf32> to vector<32x256xf32>
    %6 = arith.addf %3, %5 : vector<32x256xf32>
    %cst_6 = arith.constant 0.000000e+00 : f32
    %7 = vector.broadcast %cst_6 : f32 to vector<32x256xf32>
    %8 = arith.maximumf %6, %7 : vector<32x256xf32>
    %c0_7 = arith.constant 0 : index
    %c0_8 = arith.constant 0 : index
    %9 = vector.load %arg5[%c0_7, %c0_8] : memref<4x32xbf16, #tpu.memory_space<vmem>>, vector<4x32xbf16>
    %10 = arith.truncf %8 : vector<32x256xf32> to vector<32x256xbf16>
    %cst_9 = arith.constant dense<0.000000e+00> : vector<4x256xf32>
    %11 = tpu.matmul %9, %10, %cst_9 {dimension_numbers = #tpu.dot_dimension_numbers<[1], [0], [0], [1], [0, 0, 1, 1], [], []>} : vector<4x32xbf16>, vector<32x256xbf16>, vector<4x256xf32> -> vector<4x256xf32>
    %c0_10 = arith.constant 0 : index
    %c0_11 = arith.constant 0 : index
    %12 = vector.load %arg6[%c0_10, %c0_11] : memref<4x1xf32, #tpu.memory_space<vmem>>, vector<4x1xf32>
    %13 = vector.broadcast %12 : vector<4x1xf32> to vector<4x256xf32>
    %14 = arith.addf %11, %13 : vector<4x256xf32>
    %c0_12 = arith.constant 0 : index
    %c0_13 = arith.constant 0 : index
    %c0_14 = arith.constant 0 : index
    %15 = vector.load %arg7[%c0_12, %c0_13, %c0_14] : memref<1x4x256xf32, #tpu.memory_space<vmem>>, vector<1x4x256xf32>
    %16 = vector.shape_cast %15 : vector<1x4x256xf32> to vector<4x256xf32>
    %17 = vector.shape_cast %14 : vector<4x256xf32> to vector<1x4x256xf32>
    tpu.vector_store %arg7[%c0_12, %c0_13, %c0_14], %17 {strides = array<i32>} : memref<1x4x256xf32, #tpu.memory_space<vmem>>, vector<1x4x256xf32>,
    return
  }
  func.func @transform_0(%arg0: i32, %arg1: i32) -> (i32, i32, i32) {
    %c0_i32 = arith.constant 0 : i32
    %c0_i32_0 = arith.constant 0 : i32
    return %arg0, %c0_i32, %arg1 : i32, i32, i32
  }
  func.func @transform_1(%arg0: i32, %arg1: i32) -> (i32, i32) {
    %c0_i32 = arith.constant 0 : i32
    %c0_i32_0 = arith.constant 0 : i32
    %c0_i32_1 = arith.constant 0 : i32
    return %c0_i32, %c0_i32_0 : i32, i32
  }
  func.func @transform_2(%arg0: i32, %arg1: i32) -> (i32, i32) {
    %c0_i32 = arith.constant 0 : i32
    %c0_i32_0 = arith.constant 0 : i32
    %c0_i32_1 = arith.constant 0 : i32
    return %c0_i32, %c0_i32_0 : i32, i32
  }
  func.func @transform_3(%arg0: i32, %arg1: i32) -> (i32, i32) {
    %c0_i32 = arith.constant 0 : i32
    %c0_i32_0 = arith.constant 0 : i32
    %c0_i32_1 = arith.constant 0 : i32
    return %c0_i32, %c0_i32_0 : i32, i32
  }
  func.func @transform_4(%arg0: i32, %arg1: i32) -> (i32, i32) {
    %c0_i32 = arith.constant 0 : i32
    %c0_i32_0 = arith.constant 0 : i32
    %c0_i32_1 = arith.constant 0 : i32
    return %c0_i32, %c0_i32_0 : i32, i32
  }
  func.func @transform_5(%arg0: i32, %arg1: i32) -> (i32, i32, i32) {
    %c0_i32 = arith.constant 0 : i32
    %c0_i32_0 = arith.constant 0 : i32
    return %arg0, %c0_i32, %arg1 : i32, i32, i32
  }
}

</mosaic_0001>

<llo_original>
// kernel: fno_forward.6
$region0: #{fno_forward.6}
  #allocation0 [shape = 'u32[]', space=smem, size = 0x4, offset = 0x4, fixed_abs, tag = 'smem constant byte address 0x4 - core index']
  #allocation1 [shape = 'u32[144,128]{1,0:T(1,128)}', space=vmem, size = 0x12000, scoped, tag = 'internal scratch']
  %s0 = inlined_call_operand.vmem [shape: bf16[2,4,256], index: 0, kind: input, shape index: {}]
  %s1 = inlined_call_operand.vmem [shape: bf16[16,4], index: 1, kind: input, shape index: {}]
  %s2 = inlined_call_operand.vmem [shape: f32[16,1], index: 2, kind: input, shape index: {}]
  %s3 = inlined_call_operand.vmem [shape: bf16[2,16,256], index: 3, kind: output, shape index: {}]
  %s4 = sld [smem:[#allocation0]]
  $region45: #{fno_forward.6} parent=0
    _
  %s6 = ssub.s32 1, %s4
  %s7 = scalar_select 0, %s6, %s4
  loop: start=0, step=1, limit=4
  $region2: #{fno_forward.6} parent=0 // loop_pre_header
    _
  $region3: #{fno_forward.6} parent=0 // loop_header
    %s9 = sphi 0, %s13
    %p10 = scmp.ge.s32.totalorder %s9, 4
    %s16 = sphi 0, %s28
    %s17 = sphi 0, %s24
    %s18 = sphi 0, %s16
    %s19 = sphi 0, %s17
    %s20 = sphi 0, %s18
    %s21 = sphi 0, %s19
    %s33 = sphi 0, %s35
    %s36 = sphi 0, %s33
    %s37 = sphi 0, %s36
    %s53 = sphi 0, %s37
    %s57 = sphi 0, %s57
    %s59 = sphi 0, %s57
    %s60 = sphi 0, %s59
    %s74 = sphi 0, %s60
    %s78 = sphi 0, %s78
    %s80 = sphi 0, %s78
    %s81 = sphi 0, %s80
    %s95 = sphi 0, %s81
    %s103 = sphi 0, %s105
    %s106 = sphi 0, %s103
    %s107 = sphi 0, %s106
    %s123 = sphi 0, %s107
  $region4: #{fno_forward.6} parent=0 // loop_header_branch
    %12 = sbr.rel (%p10) target = $region8
  $region5: #{fno_forward.6} parent=0 // loop_body
    %s14 = ssub.s32 %s9, 1
    %s15 = ssub.s32 %s9, 2
    %s22 = sadd.s32 1, %s17
    %p23 = scmp.ge.s32.totalorder %s22, 1
    %s24 = scalar_select %p23, 0, %s22
    %s25 = sadd.s32 1, %s16
    %s26 = scalar_select %p23, %s25, %s16
    %p27 = scmp.ge.s32.totalorder %s26, 2
    %s28 = scalar_select %p27, 0, %s26
    %s29 = ssub.s32 %s16, %s28
    %s30 = ssub.s32 %s17, %s24
    %s31 = sor.u32 %s29, %s30
    %p32 = scmp.eq.s32.totalorder %s31, 0
    %s34 = sadd.s32 %s33, 1
    %s35 = scalar_select %p32, %s33, %s34
    %p38 = pneg %p32
    %p39 = scmp.eq.s32.totalorder %s9, 1
    %p40 = por %p38, %p39
    %p41 = scmp.ne.s32.totalorder %s33, %s36
    %p42 = scmp.eq.s32.totalorder %s9, 0
    %p43 = por %p41, %p42
    %p44 = scmp.ne.s32.totalorder %s33, %s36
    %p45 = scmp.eq.s32.totalorder %s14, 1
    %p46 = por %p44, %p45
    %p47 = scmp.ne.s32.totalorder %s36, %s37
    %p48 = scmp.eq.s32.totalorder %s14, 0
    %p49 = por %p47, %p48
    %p50 = scmp.ne.s32.totalorder %s36, %s37
    %p51 = scmp.eq.s32.totalorder %s15, 1
    %p52 = por %p50, %p51
    %p54 = scmp.ne.s32.totalorder %s37, %s53
    %p55 = scmp.eq.s32.totalorder %s15, 0
    %p56 = por %p54, %p55
    %s58 = sadd.s32 %s57, 1
    %p61 = scmp.eq.s32.totalorder %s9, 1
    %p62 = scmp.ne.s32.totalorder %s57, %s59
    %p63 = scmp.eq.s32.totalorder %s9, 0
    %p64 = por %p62, %p63
    %p65 = scmp.ne.s32.totalorder %s57, %s59
    %p66 = scmp.eq.s32.totalorder %s14, 1
    %p67 = por %p65, %p66
    %p68 = scmp.ne.s32.totalorder %s59, %s60
    %p69 = scmp.eq.s32.totalorder %s14, 0
    %p70 = por %p68, %p69
    %p71 = scmp.ne.s32.totalorder %s59, %s60
    %p72 = scmp.eq.s32.totalorder %s15, 1
    %p73 = por %p71, %p72
    %p75 = scmp.ne.s32.totalorder %s60, %s74
    %p76 = scmp.eq.s32.totalorder %s15, 0
    %p77 = por %p75, %p76
    %s79 = sadd.s32 %s78, 1
    %p82 = scmp.eq.s32.totalorder %s9, 1
    %p83 = scmp.ne.s32.totalorder %s78, %s80
    %p84 = scmp.eq.s32.totalorder %s9, 0
    %p85 = por %p83, %p84
    %p86 = scmp.ne.s32.totalorder %s78, %s80
    %p87 = scmp.eq.s32.totalorder %s14, 1
    %p88 = por %p86, %p87
    %p89 = scmp.ne.s32.totalorder %s80, %s81
    %p90 = scmp.eq.s32.totalorder %s14, 0
    %p91 = por %p89, %p90
    %p92 = scmp.ne.s32.totalorder %s80, %s81
    %p93 = scmp.eq.s32.totalorder %s15, 1
    %p94 = por %p92, %p93
    %p96 = scmp.ne.s32.totalorder %s81, %s95
    %p97 = scmp.eq.s32.totalorder %s15, 0
    %p98 = por %p96, %p97
    %s99 = ssub.s32 %s16, %s28
    %s100 = ssub.s32 %s17, %s24
    %s101 = sor.u32 %s99, %s100
    %p102 = scmp.eq.s32.totalorder %s101, 0
    %s104 = sadd.s32 %s103, 1
    %s105 = scalar_select %p102, %s103, %s104
    %p108 = pneg %p102
    %p109 = scmp.eq.s32.totalorder %s9, 1
    %p110 = por %p108, %p109
    %p111 = scmp.ne.s32.totalorder %s103, %s106
    %p112 = scmp.eq.s32.totalorder %s9, 0
    %p113 = por %p111, %p112
    %p114 = scmp.ne.s32.totalorder %s103, %s106
    %p115 = scmp.eq.s32.totalorder %s14, 1
    %p116 = por %p114, %p115
    %p117 = scmp.ne.s32.totalorder %s106, %s107
    %p118 = scmp.eq.s32.totalorder %s14, 0
    %p119 = por %p117, %p118
    %p120 = scmp.ne.s32.totalorder %s106, %s107
    %p121 = scmp.eq.s32.totalorder %s15, 1
    %p122 = por %p120, %p121
    %p124 = scmp.ne.s32.totalorder %s107, %s123
    %p125 = scmp.eq.s32.totalorder %s15, 0
    %p126 = por %p124, %p125
    %p127 = scmp.le.s32.totalorder 1, %s9
    %p128 = scmp.lt.s32.totalorder %s9, 3
    %p129 = pnand %p127, %p128
    %p130 = pneg %p129
    // Predicated region
    $region9: #{fno_forward.6} parent=5 // pred_check
      _
    $region10: #{fno_forward.6} parent=5 // pred_check_branch
      %132 = sbr.rel (%p129) target = $region12
    $region11: #{fno_forward.6} parent=5 // pred_region
      %s133 = ssub.s32 %s9, 1
      // Predicated region
      $region13: #{fno_forward.6} parent=11 // pred_check
        %p134 = pneg %p70
      $region14: #{fno_forward.6} parent=11 // pred_check_branch
        %136 = sbr.rel (%p134) target = $region16
      $region15: #{fno_forward.6} parent=11 // pred_region
        _
      $region16: #{fno_forward.6} parent=11 // pred_fallthru
        _
      // Predicated region
      $region17: #{fno_forward.6} parent=11 // pred_check
        %p137 = pneg %p91
      $region18: #{fno_forward.6} parent=11 // pred_check_branch
        %139 = sbr.rel (%p137) target = $region20
      $region19: #{fno_forward.6} parent=11 // pred_region
        _
      $region20: #{fno_forward.6} parent=11 // pred_fallthru
        _
    $region12: #{fno_forward.6} parent=5 // pred_fallthru
      _
    %p140 = scmp.lt.s32.totalorder %s9, 2
    // Predicated region
    $region21: #{fno_forward.6} parent=5 // pred_check
      %p141 = pneg %p140
    $region22: #{fno_forward.6} parent=5 // pred_check_branch
      %143 = sbr.rel (%p141) target = $region24
    $region23: #{fno_forward.6} parent=5 // pred_region
      // Predicated region
      $region25: #{fno_forward.6} parent=23 // pred_check
        %p144 = pneg %p43
      $region26: #{fno_forward.6} parent=23 // pred_check_branch
        %146 = sbr.rel (%p144) target = $region28
      $region27: #{fno_forward.6} parent=23 // pred_region
        %s147 = smul.u32 2, %s17
        %p148 = scmp.lt.s32.totalorder %s16, 1
        %s149 = scalar_select %p148, %s16, 1
        %p150 = scmp.lt.s32.totalorder %s147, 1
        %s151 = scalar_select %p150, %s147, 1
        %s152 = smul.addr %s149, 2
        %s153 = sadd.s32 %s151, %s152
        %s154 = smul.addr %s153, 2
        %s155 = scalar_lea.vmem %s0, %s154
        %s156 = smul.u32 2, %s17
      $region28: #{fno_forward.6} parent=23 // pred_fallthru
        _
    $region24: #{fno_forward.6} parent=5 // pred_fallthru
      _
    %p157 = scmp.le.s32.totalorder 1, %s9
    %p158 = scmp.lt.s32.totalorder %s9, 3
    %p159 = pnand %p157, %p158
    %p160 = pneg %p159
    // Predicated region
    $region29: #{fno_forward.6} parent=5 // pred_check
      _
    $region30: #{fno_forward.6} parent=5 // pred_check_branch
      %162 = sbr.rel (%p159) target = $region32
    $region31: #{fno_forward.6} parent=5 // pred_region
      %s163 = ssub.s32 %s9, 1
      %s164 = smul.u32 2, %s19
      %p165 = scmp.lt.s32.totalorder %s18, 1
      %s166 = scalar_select %p165, %s18, 1
      %p167 = scmp.lt.s32.totalorder %s164, 1
      %s168 = scalar_select %p167, %s164, 1
      %s169 = smul.addr %s166, 2
      %s170 = sadd.s32 %s168, %s169
      %s171 = smul.addr %s170, 2
      %s172 = scalar_lea.vmem %s0, %s171
      %p173 = pneg %p49
      %p174 = pneg %p46
      %p175 = pneg %p70
      %p176 = pneg %p67
      %p177 = pneg %p91
      %p178 = pneg %p88
      %p179 = pneg %p119
      %p180 = pneg %p116
      %s181 = smul.u32 2, %s19
      %p182 = scmp.lt.s32.totalorder %s18, 1
      %s183 = scalar_select %p182, %s18, 1
      %p184 = scmp.lt.s32.totalorder %s181, 1
      %s185 = scalar_select %p184, %s181, 1
      %s186 = smul.addr %s183, 4
      %s187 = sadd.s32 %s185, %s186
      %s188 = smul.addr %s187, 4
      %s189 = scalar_lea.vmem %s3, %s188
      %s190 = smul.u32 2, %s19
      %p191 = scmp.lt.s32.totalorder %s18, 1
      %s192 = scalar_select %p191, %s18, 1
      %p193 = scmp.lt.s32.totalorder %s190, 1
      %s194 = scalar_select %p193, %s190, 1
      %s195 = smul.addr %s192, 2
      %s196 = sadd.s32 %s194, %s195
      %s197 = smul.addr %s196, 2
      %s198 = scalar_lea.vmem %s0, %s197
      %s199 = smul.u32 2, %s19
      %s200 = smul.u32 2, %s19
      %p201 = scmp.lt.s32.totalorder %s18, 1
      %s202 = scalar_select %p201, %s18, 1
      %p203 = scmp.lt.s32.totalorder %s200, 1
      %s204 = scalar_select %p203, %s200, 1
      %s205 = smul.addr %s202, 4
      %s206 = sadd.s32 %s204, %s205
      %s207 = smul.addr %s206, 4
      %s208 = scalar_lea.vmem %s3, %s207
      %s209 = smul.u32 2, %s19
      %v211 = vld [vmem:[%s1] sm:$0xf]
      %v212 = vld [vmem:[%s1 + $0x4] sm:$0xf]
      %v213 = vld [vmem:[%s198] sm:$0xf]
      %v214 = vld [vmem:[%s2] sm:$0xff]
      %v215 = vld [vmem:[%s2 + $0x8] sm:$0xff]
      %217 = vset.pattern.permute.xlu0 0
      %218 = vperm.xlu0 %217, %v214
      %v219 = vpop.permute.xlu0 %218
      %222 = vset.pattern.permute.xlu0 0
      %223 = vperm.xlu0 %222, %v215
      %v224 = vpop.permute.xlu0 %223
      %v228 = vunpack.c.l.b16 %v211
      %v229 = vunpack.c.l.b16 %v212
      %v230 = vpack.c.b16 %v229, %v228
      %v233 = vunpack.c.l.s4 1983009808
      %v234 = vunpack.c.0.s8 %v233
      %v235 = vlaneseq
      %v236 = vshrl.u32 %v235, 7
      %v237 = vsub.s32 %v234, %v236
      %v238 = vrot.slane %v213, %v237
      %v239 = vcombine.high %v238, %v238
      %vm240 = vcmask 31744
      %v242 = vsel %vm240, %v230, 0
      %vm244 = vcmask 1041408
      %v246 = vsel %vm244, %v238, 0
      %v249 = vsel %vm244, %v239, 0
      %251 = vmatprep.subr.bf16.mxu0 %v249
      %252 = vmatpush1.bf16.msra.mxu0 %v246
      %253 = vmatprep.subr.bf16.mxu0 0
      %254 = vmatpush1.bf16.msra.mxu0 0
      %255 = vmatprep.subr.bf16.mxu0 0
      %256 = vmatpush1.bf16.msra.mxu0 0
      %257 = vmatprep.subr.bf16.mxu0 0
      %258 = vmatpush1.bf16.msra.mxu0 0
      %259 = vmatprep.subr.bf16.mxu0 0
      %260 = vmatpush1.bf16.msra.mxu0 0
      %261 = vmatprep.subr.bf16.mxu0 0
      %262 = vmatpush1.bf16.msra.mxu0 0
      %263 = vmatprep.subr.bf16.mxu0 0
      %264 = vmatpush1.bf16.msra.mxu0 0
      %265 = vmatprep.subr.bf16.mxu0 0
      %266 = vmatpush1.bf16.msra.mxu0 0
      %267 = vmatprep.subr.bf16.mxu0 0
      %268 = vmatpush1.bf16.msra.mxu0 0
      %269 = vmatprep.subr.bf16.mxu0 0
      %270 = vmatpush1.bf16.msra.mxu0 0
      %271 = vmatprep.subr.bf16.mxu0 0
      %272 = vmatpush1.bf16.msra.mxu0 0
      %273 = vmatprep.subr.bf16.mxu0 0
      %274 = vmatpush1.bf16.msra.mxu0 0
      %275 = vmatprep.subr.bf16.mxu0 0
      %276 = vmatpush1.bf16.msra.mxu0 0
      %277 = vmatprep.subr.bf16.mxu0 0
      %278 = vmatpush1.bf16.msra.mxu0 0
      %279 = vmatprep.subr.bf16.mxu0 0
      %280 = vmatpush1.bf16.msra.mxu0 0
      %281 = vmatprep.subr.bf16.mxu0 0
      %282 = vmatpush1.bf16.msra.mxu0 0
      %283 = vmatprep.mubr.bf16.mxu0 0
      %284 = vmatmul.mubr.bf16.gmra.mrb[0].mxu0 %v242
      %v285 = vpop.f32.mrb[0].mxu0
      %v286 = vadd.f32 %v219, %v285
      %v287 = vpop.f32.mrb[0].mxu0
      %v288 = vadd.f32 %v219, %v287
      %v289 = vpop.f32.mrb[0].mxu0
      %v290 = vadd.f32 %v224, %v289
      %v291 = vpop.f32.mrb[0].mxu0
      %v292 = vadd.f32 %v224, %v291
      %293 = vdwg.mxu0
      %v294 = vpack.c.bf16 %v290, %v286
      %v295 = vpack.c.bf16 %v292, %v288
      %v298 = vunpack.c.l.b16 %v294
      %v299 = vunpack.c.l.b16 %v295
      %v300 = vunpack.c.h.b16 %v294
      %v301 = vunpack.c.h.b16 %v295
      %v302 = vpack.c.b16 %v299, %v298
      %v303 = vpack.c.b16 %v301, %v300
      %306 = vst [vmem:[%s208] sm:$0xff] %v302
      %307 = vst [vmem:[%s208 + $0x8] sm:$0xff] %v303
      %s308 = smul.u32 2, %s19
      %p309 = scmp.lt.s32.totalorder %s18, 1
      %s310 = scalar_select %p309, %s18, 1
      %p311 = scmp.lt.s32.totalorder %s308, 1
      %s312 = scalar_select %p311, %s308, 1
      %s313 = smul.addr %s310, 4
      %s314 = sadd.s32 %s312, %s313
      %s315 = smul.addr %s314, 4
      %s316 = scalar_lea.vmem %s3, %s315
      // Predicated region
      $region33: #{fno_forward.6} parent=31 // pred_check
        %p317 = pneg %p116
      $region34: #{fno_forward.6} parent=31 // pred_check_branch
        %319 = sbr.rel (%p317) target = $region36
      $region35: #{fno_forward.6} parent=31 // pred_region
        %s320 = smul.u32 2, %s19
      $region36: #{fno_forward.6} parent=31 // pred_fallthru
        _
    $region32: #{fno_forward.6} parent=5 // pred_fallthru
      _
    %p321 = scmp.le.s32.totalorder 2, %s9
    // Predicated region
    $region37: #{fno_forward.6} parent=5 // pred_check
      %p322 = pneg %p321
    $region38: #{fno_forward.6} parent=5 // pred_check_branch
      %324 = sbr.rel (%p322) target = $region40
    $region39: #{fno_forward.6} parent=5 // pred_region
      %s325 = ssub.s32 %s9, 2
      // Predicated region
      $region41: #{fno_forward.6} parent=39 // pred_check
        %p326 = pneg %p122
      $region42: #{fno_forward.6} parent=39 // pred_check_branch
        %328 = sbr.rel (%p326) target = $region44
      $region43: #{fno_forward.6} parent=39 // pred_region
        %s329 = smul.u32 2, %s21
        %p330 = scmp.lt.s32.totalorder %s20, 1
        %s331 = scalar_select %p330, %s20, 1
        %p332 = scmp.lt.s32.totalorder %s329, 1
        %s333 = scalar_select %p332, %s329, 1
        %s334 = smul.addr %s331, 4
        %s335 = sadd.s32 %s333, %s334
        %s336 = smul.addr %s335, 4
        %s337 = scalar_lea.vmem %s3, %s336
      $region44: #{fno_forward.6} parent=39 // pred_fallthru
        _
    $region40: #{fno_forward.6} parent=5 // pred_fallthru
      _
  $region6: #{fno_forward.6} parent=0 // loop_footer
    %s13 = sadd.s32 1, %s9
  $region7: #{fno_forward.6} parent=0 // loop_footer_branch
    %8 = sbr.rel target = $region3
  $region8: #{fno_forward.6} parent=0 // loop_exit
    _

// kernel: custom-call
$region0: #{custom-call}
  %s0 = inlined_call_operand.hbm [shape: c64[4,4,16,16], index: 0, kind: input, shape index: {}]
  %s1 = inlined_call_operand.vmem [shape: f32[4,4,16,16], index: 1, kind: output, shape index: {}]
  $region1: #{custom-call} parent=0
    #allocation0 [shape = 's32[1]{0}', space=sflag, size = 0x4, scoped, tag = 'scoped memory for custom-call']
    %2 = vsyncpa [#allocation0], 0
    %s3 = sshll.u32 %s1, 4
    %s4 = int_to_ptr.vmem [resolvable:$true] %s3
    %6 = dma.hbm_to_vmem [thread:$0]  %s0, 4096, %s4, [#allocation0]
    %7 = dma.done [#allocation0], 4096
    %8 = vsyncpa [#allocation0], 1

// kernel: custom-call.1
$region0: #{custom-call.1}
  %s0 = inlined_call_operand.hbm [shape: c64[4,4,16,16], index: 0, kind: input, shape index: {}]
  %s1 = inlined_call_operand.vmem [shape: f32[4,4,16,16], index: 1, kind: output, shape index: {}]
  %s2 = scalar_lea.hbm %s0, 4096
  $region1: #{custom-call.1} parent=0
    #allocation0 [shape = 's32[1]{0}', space=sflag, size = 0x4, scoped, tag = 'scoped memory for custom-call.1']
    %3 = vsyncpa [#allocation0], 0
    %s4 = sshll.u32 %s1, 4
    %s5 = int_to_ptr.vmem [resolvable:$true] %s4
    %7 = dma.hbm_to_vmem [thread:$0]  %s2, 4096, %s5, [#allocation0]
    %8 = dma.done [#allocation0], 4096
    %9 = vsyncpa [#allocation0], 1

// kernel: reverse.8
$region0: #{reverse.8}
  #allocation0 [shape = 's32[1]{0}', space=sflag, size = 0x4, scoped, tag = 'scoped memory for reverse.8']
  %s0 = inlined_call_operand.vmem [shape: f32[2,16,16,7], index: 0, kind: input, shape index: {}]
  %s1 = inlined_call_operand.vmem [shape: f32[2,16,16,7], index: 1, kind: output, shape index: {}]
  %s2 = scalar_lea.vmem %s0, 96
  %v3 = vld [vmem:[%s2] sm:$0xff]
  %4 = vst [vmem:[%s1] sm:$0xff] %v3
  %s5 = scalar_lea.vmem %s0, 208
  %v6 = vld [vmem:[%s5] sm:$0xff]
  %s7 = scalar_lea.vmem %s1, 112
  %8 = vst [vmem:[%s7] sm:$0xff] %v6
  %s9 = scalar_lea.vmem %s0, 80
  %v10 = vld [vmem:[%s9] sm:$0xff]
  %s11 = scalar_lea.vmem %s1, 16
  %12 = vst [vmem:[%s11] sm:$0xff] %v10
  %s13 = scalar_lea.vmem %s0, 192
  %v14 = vld [vmem:[%s13] sm:$0xff]
  %s15 = scalar_lea.vmem %s1, 128
  %16 = vst [vmem:[%s15] sm:$0xff] %v14
  %s17 = scalar_lea.vmem %s0, 64
  %v18 = vld [vmem:[%s17] sm:$0xff]
  %s19 = scalar_lea.vmem %s1, 32
  %20 = vst [vmem:[%s19] sm:$0xff] %v18
  %s21 = scalar_lea.vmem %s0, 176
  %v22 = vld [vmem:[%s21] sm:$0xff]
  %s23 = scalar_lea.vmem %s1, 144
  %24 = vst [vmem:[%s23] sm:$0xff] %v22
  %s25 = scalar_lea.vmem %s0, 48
  %v26 = vld [vmem:[%s25] sm:$0xff]
  %s27 = scalar_lea.vmem %s1, 48
  %28 = vst [vmem:[%s27] sm:$0xff] %v26
  %s29 = scalar_lea.vmem %s0, 160
  %v30 = vld [vmem:[%s29] sm:$0xff]
  %s31 = scalar_lea.vmem %s1, 160
  %32 = vst [vmem:[%s31] sm:$0xff] %v30
  %s33 = scalar_lea.vmem %s0, 32
  %v34 = vld [vmem:[%s33] sm:$0xff]
  %s35 = scalar_lea.vmem %s1, 64
  %36 = vst [vmem:[%s35] sm:$0xff] %v34
  %s37 = scalar_lea.vmem %s0, 144
  %v38 = vld [vmem:[%s37] sm:$0xff]
  %s39 = scalar_lea.vmem %s1, 176
  %40 = vst [vmem:[%s39] sm:$0xff] %v38
  %s41 = scalar_lea.vmem %s0, 16
  %v42 = vld [vmem:[%s41] sm:$0xff]
  %s43 = scalar_lea.vmem %s1, 80
  %44 = vst [vmem:[%s43] sm:$0xff] %v42
  %s45 = scalar_lea.vmem %s0, 128
  %v46 = vld [vmem:[%s45] sm:$0xff]
  %s47 = scalar_lea.vmem %s1, 192
  %48 = vst [vmem:[%s47] sm:$0xff] %v46
  %v49 = vld [vmem:[%s0] sm:$0xff]
  %s50 = scalar_lea.vmem %s1, 96
  %51 = vst [vmem:[%s50] sm:$0xff] %v49
  %s52 = scalar_lea.vmem %s0, 112
  %v53 = vld [vmem:[%s52] sm:$0xff]
  %s54 = scalar_lea.vmem %s1, 208
  %55 = vst [vmem:[%s54] sm:$0xff] %v53
  %s56 = scalar_lea.vmem %s0, 104
  %v57 = vld [vmem:[%s56] sm:$0xff]
  %s58 = scalar_lea.vmem %s1, 8
  %59 = vst [vmem:[%s58] sm:$0xff] %v57
  %s60 = scalar_lea.vmem %s0, 216
  %v61 = vld [vmem:[%s60] sm:$0xff]
  %s62 = scalar_lea.vmem %s1, 120
  %63 = vst [vmem:[%s62] sm:$0xff] %v61
  %s64 = scalar_lea.vmem %s0, 88
  %v65 = vld [vmem:[%s64] sm:$0xff]
  %s66 = scalar_lea.vmem %s1, 24
  %67 = vst [vmem:[%s66] sm:$0xff] %v65
  %s68 = scalar_lea.vmem %s0, 200
  %v69 = vld [vmem:[%s68] sm:$0xff]
  %s70 = scalar_lea.vmem %s1, 136
  %71 = vst [vmem:[%s70] sm:$0xff] %v69
  %s72 = scalar_lea.vmem %s0, 72
  %v73 = vld [vmem:[%s72] sm:$0xff]
  %s74 = scalar_lea.vmem %s1, 40
  %75 = vst [vmem:[%s74] sm:$0xff] %v73
  %s76 = scalar_lea.vmem %s0, 184
  %v77 = vld [vmem:[%s76] sm:$0xff]
  %s78 = scalar_lea.vmem %s1, 152
  %79 = vst [vmem:[%s78] sm:$0xff] %v77
  %s80 = scalar_lea.vmem %s0, 56
  %v81 = vld [vmem:[%s80] sm:$0xff]
  %s82 = scalar_lea.vmem %s1, 56
  %83 = vst [vmem:[%s82] sm:$0xff] %v81
  %s84 = scalar_lea.vmem %s0, 168
  %v85 = vld [vmem:[%s84] sm:$0xff]
  %s86 = scalar_lea.vmem %s1, 168
  %87 = vst [vmem:[%s86] sm:$0xff] %v85
  %s88 = scalar_lea.vmem %s0, 40
  %v89 = vld [vmem:[%s88] sm:$0xff]
  %s90 = scalar_lea.vmem %s1, 72
  %91 = vst [vmem:[%s90] sm:$0xff] %v89
  %s92 = scalar_lea.vmem %s0, 152
  %v93 = vld [vmem:[%s92] sm:$0xff]
  %s94 = scalar_lea.vmem %s1, 184
  %95 = vst [vmem:[%s94] sm:$0xff] %v93
  %s96 = scalar_lea.vmem %s0, 24
  %v97 = vld [vmem:[%s96] sm:$0xff]
  %s98 = scalar_lea.vmem %s1, 88
  %99 = vst [vmem:[%s98] sm:$0xff] %v97
  %s100 = scalar_lea.vmem %s0, 136
  %v101 = vld [vmem:[%s100] sm:$0xff]
  %s102 = scalar_lea.vmem %s1, 200
  %103 = vst [vmem:[%s102] sm:$0xff] %v101
  %s104 = scalar_lea.vmem %s0, 8
  %v105 = vld [vmem:[%s104] sm:$0xff]
  %s106 = scalar_lea.vmem %s1, 104
  %107 = vst [vmem:[%s106] sm:$0xff] %v105
  %s108 = scalar_lea.vmem %s0, 120
  %v109 = vld [vmem:[%s108] sm:$0xff]
  %s110 = scalar_lea.vmem %s1, 216
  %111 = vst [vmem:[%s110] sm:$0xff] %v109

// kernel: fno_forward.7
$region0: #{fno_forward.7}
  #allocation0 [shape = 'u32[]', space=smem, size = 0x4, offset = 0x4, fixed_abs, tag = 'smem constant byte address 0x4 - core index']
  #allocation1 [shape = 'u32[144,128]{1,0:T(1,128)}', space=vmem, size = 0x12000, scoped, tag = 'internal scratch']
  %s0 = inlined_call_operand.vmem [shape: bf16[2,16,256], index: 0, kind: input, shape index: {}]
  %s1 = inlined_call_operand.vmem [shape: bf16[16,16], index: 1, kind: input, shape index: {}]
  %s2 = inlined_call_operand.vmem [shape: f32[16,1], index: 2, kind: input, shape index: {}]
  %s3 = inlined_call_operand.vmem [shape: bf16[2,16,256], index: 3, kind: input, shape index: {}]
  %s4 = inlined_call_operand.vmem [shape: bf16[2,16,256], index: 4, kind: output, shape index: {}]
  %s5 = sld [smem:[#allocation0]]
  $region49: #{fno_forward.7} parent=0
    _
  %s7 = ssub.s32 1, %s5
  %s8 = scalar_select 0, %s7, %s5
  loop: start=0, step=1, limit=4
  $region2: #{fno_forward.7} parent=0 // loop_pre_header
    _
  $region3: #{fno_forward.7} parent=0 // loop_header
    %s10 = sphi 0, %s14
    %p11 = scmp.ge.s32.totalorder %s10, 4
    %s17 = sphi 0, %s29
    %s18 = sphi 0, %s25
    %s19 = sphi 0, %s17
    %s20 = sphi 0, %s18
    %s21 = sphi 0, %s19
    %s22 = sphi 0, %s20
    %s34 = sphi 0, %s36
    %s37 = sphi 0, %s34
    %s38 = sphi 0, %s37
    %s54 = sphi 0, %s38
    %s58 = sphi 0, %s58
    %s60 = sphi 0, %s58
    %s61 = sphi 0, %s60
    %s75 = sphi 0, %s61
    %s79 = sphi 0, %s79
    %s81 = sphi 0, %s79
    %s82 = sphi 0, %s81
    %s96 = sphi 0, %s82
    %s104 = sphi 0, %s106
    %s107 = sphi 0, %s104
    %s108 = sphi 0, %s107
    %s124 = sphi 0, %s108
    %s132 = sphi 0, %s134
    %s135 = sphi 0, %s132
    %s136 = sphi 0, %s135
    %s152 = sphi 0, %s136
  $region4: #{fno_forward.7} parent=0 // loop_header_branch
    %13 = sbr.rel (%p11) target = $region8
  $region5: #{fno_forward.7} parent=0 // loop_body
    %s15 = ssub.s32 %s10, 1
    %s16 = ssub.s32 %s10, 2
    %s23 = sadd.s32 1, %s18
    %p24 = scmp.ge.s32.totalorder %s23, 1
    %s25 = scalar_select %p24, 0, %s23
    %s26 = sadd.s32 1, %s17
    %s27 = scalar_select %p24, %s26, %s17
    %p28 = scmp.ge.s32.totalorder %s27, 2
    %s29 = scalar_select %p28, 0, %s27
    %s30 = ssub.s32 %s17, %s29
    %s31 = ssub.s32 %s18, %s25
    %s32 = sor.u32 %s30, %s31
    %p33 = scmp.eq.s32.totalorder %s32, 0
    %s35 = sadd.s32 %s34, 1
    %s36 = scalar_select %p33, %s34, %s35
    %p39 = pneg %p33
    %p40 = scmp.eq.s32.totalorder %s10, 1
    %p41 = por %p39, %p40
    %p42 = scmp.ne.s32.totalorder %s34, %s37
    %p43 = scmp.eq.s32.totalorder %s10, 0
    %p44 = por %p42, %p43
    %p45 = scmp.ne.s32.totalorder %s34, %s37
    %p46 = scmp.eq.s32.totalorder %s15, 1
    %p47 = por %p45, %p46
    %p48 = scmp.ne.s32.totalorder %s37, %s38
    %p49 = scmp.eq.s32.totalorder %s15, 0
    %p50 = por %p48, %p49
    %p51 = scmp.ne.s32.totalorder %s37, %s38
    %p52 = scmp.eq.s32.totalorder %s16, 1
    %p53 = por %p51, %p52
    %p55 = scmp.ne.s32.totalorder %s38, %s54
    %p56 = scmp.eq.s32.totalorder %s16, 0
    %p57 = por %p55, %p56
    %s59 = sadd.s32 %s58, 1
    %p62 = scmp.eq.s32.totalorder %s10, 1
    %p63 = scmp.ne.s32.totalorder %s58, %s60
    %p64 = scmp.eq.s32.totalorder %s10, 0
    %p65 = por %p63, %p64
    %p66 = scmp.ne.s32.totalorder %s58, %s60
    %p67 = scmp.eq.s32.totalorder %s15, 1
    %p68 = por %p66, %p67
    %p69 = scmp.ne.s32.totalorder %s60, %s61
    %p70 = scmp.eq.s32.totalorder %s15, 0
    %p71 = por %p69, %p70
    %p72 = scmp.ne.s32.totalorder %s60, %s61
    %p73 = scmp.eq.s32.totalorder %s16, 1
    %p74 = por %p72, %p73
    %p76 = scmp.ne.s32.totalorder %s61, %s75
    %p77 = scmp.eq.s32.totalorder %s16, 0
    %p78 = por %p76, %p77
    %s80 = sadd.s32 %s79, 1
    %p83 = scmp.eq.s32.totalorder %s10, 1
    %p84 = scmp.ne.s32.totalorder %s79, %s81
    %p85 = scmp.eq.s32.totalorder %s10, 0
    %p86 = por %p84, %p85
    %p87 = scmp.ne.s32.totalorder %s79, %s81
    %p88 = scmp.eq.s32.totalorder %s15, 1
    %p89 = por %p87, %p88
    %p90 = scmp.ne.s32.totalorder %s81, %s82
    %p91 = scmp.eq.s32.totalorder %s15, 0
    %p92 = por %p90, %p91
    %p93 = scmp.ne.s32.totalorder %s81, %s82
    %p94 = scmp.eq.s32.totalorder %s16, 1
    %p95 = por %p93, %p94
    %p97 = scmp.ne.s32.totalorder %s82, %s96
    %p98 = scmp.eq.s32.totalorder %s16, 0
    %p99 = por %p97, %p98
    %s100 = ssub.s32 %s17, %s29
    %s101 = ssub.s32 %s18, %s25
    %s102 = sor.u32 %s100, %s101
    %p103 = scmp.eq.s32.totalorder %s102, 0
    %s105 = sadd.s32 %s104, 1
    %s106 = scalar_select %p103, %s104, %s105
    %p109 = pneg %p103
    %p110 = scmp.eq.s32.totalorder %s10, 1
    %p111 = por %p109, %p110
    %p112 = scmp.ne.s32.totalorder %s104, %s107
    %p113 = scmp.eq.s32.totalorder %s10, 0
    %p114 = por %p112, %p113
    %p115 = scmp.ne.s32.totalorder %s104, %s107
    %p116 = scmp.eq.s32.totalorder %s15, 1
    %p117 = por %p115, %p116
    %p118 = scmp.ne.s32.totalorder %s107, %s108
    %p119 = scmp.eq.s32.totalorder %s15, 0
    %p120 = por %p118, %p119
    %p121 = scmp.ne.s32.totalorder %s107, %s108
    %p122 = scmp.eq.s32.totalorder %s16, 1
    %p123 = por %p121, %p122
    %p125 = scmp.ne.s32.totalorder %s108, %s124
    %p126 = scmp.eq.s32.totalorder %s16, 0
    %p127 = por %p125, %p126
    %s128 = ssub.s32 %s17, %s29
    %s129 = ssub.s32 %s18, %s25
    %s130 = sor.u32 %s128, %s129
    %p131 = scmp.eq.s32.totalorder %s130, 0
    %s133 = sadd.s32 %s132, 1
    %s134 = scalar_select %p131, %s132, %s133
    %p137 = pneg %p131
    %p138 = scmp.eq.s32.totalorder %s10, 1
    %p139 = por %p137, %p138
    %p140 = scmp.ne.s32.totalorder %s132, %s135
    %p141 = scmp.eq.s32.totalorder %s10, 0
    %p142 = por %p140, %p141
    %p143 = scmp.ne.s32.totalorder %s132, %s135
    %p144 = scmp.eq.s32.totalorder %s15, 1
    %p145 = por %p143, %p144
    %p146 = scmp.ne.s32.totalorder %s135, %s136
    %p147 = scmp.eq.s32.totalorder %s15, 0
    %p148 = por %p146, %p147
    %p149 = scmp.ne.s32.totalorder %s135, %s136
    %p150 = scmp.eq.s32.totalorder %s16, 1
    %p151 = por %p149, %p150
    %p153 = scmp.ne.s32.totalorder %s136, %s152
    %p154 = scmp.eq.s32.totalorder %s16, 0
    %p155 = por %p153, %p154
    %p156 = scmp.le.s32.totalorder 1, %s10
    %p157 = scmp.lt.s32.totalorder %s10, 3
    %p158 = pnand %p156, %p157
    %p159 = pneg %p158
    // Predicated region
    $region9: #{fno_forward.7} parent=5 // pred_check
      _
    $region10: #{fno_forward.7} parent=5 // pred_check_branch
      %161 = sbr.rel (%p158) target = $region12
    $region11: #{fno_forward.7} parent=5 // pred_region
      %s162 = ssub.s32 %s10, 1
      // Predicated region
      $region13: #{fno_forward.7} parent=11 // pred_check
        %p163 = pneg %p71
      $region14: #{fno_forward.7} parent=11 // pred_check_branch
        %165 = sbr.rel (%p163) target = $region16
      $region15: #{fno_forward.7} parent=11 // pred_region
        _
      $region16: #{fno_forward.7} parent=11 // pred_fallthru
        _
      // Predicated region
      $region17: #{fno_forward.7} parent=11 // pred_check
        %p166 = pneg %p92
      $region18: #{fno_forward.7} parent=11 // pred_check_branch
        %168 = sbr.rel (%p166) target = $region20
      $region19: #{fno_forward.7} parent=11 // pred_region
        _
      $region20: #{fno_forward.7} parent=11 // pred_fallthru
        _
    $region12: #{fno_forward.7} parent=5 // pred_fallthru
      _
    %p169 = scmp.lt.s32.totalorder %s10, 2
    // Predicated region
    $region21: #{fno_forward.7} parent=5 // pred_check
      %p170 = pneg %p169
    $region22: #{fno_forward.7} parent=5 // pred_check_branch
      %172 = sbr.rel (%p170) target = $region24
    $region23: #{fno_forward.7} parent=5 // pred_region
      // Predicated region
      $region25: #{fno_forward.7} parent=23 // pred_check
        %p173 = pneg %p44
      $region26: #{fno_forward.7} parent=23 // pred_check_branch
        %175 = sbr.rel (%p173) target = $region28
      $region27: #{fno_forward.7} parent=23 // pred_region
        %s176 = smul.u32 2, %s18
        %p177 = scmp.lt.s32.totalorder %s17, 1
        %s178 = scalar_select %p177, %s17, 1
        %p179 = scmp.lt.s32.totalorder %s176, 1
        %s180 = scalar_select %p179, %s176, 1
        %s181 = smul.addr %s178, 4
        %s182 = sadd.s32 %s180, %s181
        %s183 = smul.addr %s182, 4
        %s184 = scalar_lea.vmem %s0, %s183
        %s185 = smul.u32 2, %s18
      $region28: #{fno_forward.7} parent=23 // pred_fallthru
        _
      // Predicated region
      $region29: #{fno_forward.7} parent=23 // pred_check
        %p186 = pneg %p114
      $region30: #{fno_forward.7} parent=23 // pred_check_branch
        %188 = sbr.rel (%p186) target = $region32
      $region31: #{fno_forward.7} parent=23 // pred_region
        %s189 = smul.u32 2, %s18
        %p190 = scmp.lt.s32.totalorder %s17, 1
        %s191 = scalar_select %p190, %s17, 1
        %p192 = scmp.lt.s32.totalorder %s189, 1
        %s193 = scalar_select %p192, %s189, 1
        %s194 = smul.addr %s191, 4
        %s195 = sadd.s32 %s193, %s194
        %s196 = smul.addr %s195, 4
        %s197 = scalar_lea.vmem %s3, %s196
        %s198 = smul.u32 2, %s18
      $region32: #{fno_forward.7} parent=23 // pred_fallthru
        _
    $region24: #{fno_forward.7} parent=5 // pred_fallthru
      _
    %p199 = scmp.le.s32.totalorder 1, %s10
    %p200 = scmp.lt.s32.totalorder %s10, 3
    %p201 = pnand %p199, %p200
    %p202 = pneg %p201
    // Predicated region
    $region33: #{fno_forward.7} parent=5 // pred_check
      _
    $region34: #{fno_forward.7} parent=5 // pred_check_branch
      %204 = sbr.rel (%p201) target = $region36
    $region35: #{fno_forward.7} parent=5 // pred_region
      %s205 = ssub.s32 %s10, 1
      %s206 = smul.u32 2, %s20
      %p207 = scmp.lt.s32.totalorder %s19, 1
      %s208 = scalar_select %p207, %s19, 1
      %p209 = scmp.lt.s32.totalorder %s206, 1
      %s210 = scalar_select %p209, %s206, 1
      %s211 = smul.addr %s208, 4
      %s212 = sadd.s32 %s210, %s211
      %s213 = smul.addr %s212, 4
      %s214 = scalar_lea.vmem %s0, %s213
      %p215 = pneg %p50
      %p216 = pneg %p47
      %p217 = pneg %p71
      %p218 = pneg %p68
      %p219 = pneg %p92
      %p220 = pneg %p89
      %s221 = smul.u32 2, %s20
      %p222 = scmp.lt.s32.totalorder %s19, 1
      %s223 = scalar_select %p222, %s19, 1
      %p224 = scmp.lt.s32.totalorder %s221, 1
      %s225 = scalar_select %p224, %s221, 1
      %s226 = smul.addr %s223, 4
      %s227 = sadd.s32 %s225, %s226
      %s228 = smul.addr %s227, 4
      %s229 = scalar_lea.vmem %s3, %s228
      %p230 = pneg %p120
      %p231 = pneg %p117
      %p232 = pneg %p148
      %p233 = pneg %p145
      %s234 = smul.u32 2, %s20
      %p235 = scmp.lt.s32.totalorder %s19, 1
      %s236 = scalar_select %p235, %s19, 1
      %p237 = scmp.lt.s32.totalorder %s234, 1
      %s238 = scalar_select %p237, %s234, 1
      %s239 = smul.addr %s236, 4
      %s240 = sadd.s32 %s238, %s239
      %s241 = smul.addr %s240, 4
      %s242 = scalar_lea.vmem %s4, %s241
      %s243 = smul.u32 2, %s20
      %p244 = scmp.lt.s32.totalorder %s19, 1
      %s245 = scalar_select %p244, %s19, 1
      %p246 = scmp.lt.s32.totalorder %s243, 1
      %s247 = scalar_select %p246, %s243, 1
      %s248 = smul.addr %s245, 4
      %s249 = sadd.s32 %s247, %s248
      %s250 = smul.addr %s249, 4
      %s251 = scalar_lea.vmem %s0, %s250
      %s252 = smul.u32 2, %s20
      %s253 = smul.u32 2, %s20
      %p254 = scmp.lt.s32.totalorder %s19, 1
      %s255 = scalar_select %p254, %s19, 1
      %p256 = scmp.lt.s32.totalorder %s253, 1
      %s257 = scalar_select %p256, %s253, 1
      %s258 = smul.addr %s255, 4
      %s259 = sadd.s32 %s257, %s258
      %s260 = smul.addr %s259, 4
      %s261 = scalar_lea.vmem %s3, %s260
      %s262 = smul.u32 2, %s20
      %s263 = smul.u32 2, %s20
      %p264 = scmp.lt.s32.totalorder %s19, 1
      %s265 = scalar_select %p264, %s19, 1
      %p266 = scmp.lt.s32.totalorder %s263, 1
      %s267 = scalar_select %p266, %s263, 1
      %s268 = smul.addr %s265, 4
      %s269 = sadd.s32 %s267, %s268
      %s270 = smul.addr %s269, 4
      %s271 = scalar_lea.vmem %s4, %s270
      %s272 = smul.u32 2, %s20
      %v274 = vld [vmem:[%s1] sm:$0xf]
      %v275 = vld [vmem:[%s1 + $0x4] sm:$0xf]
      %v276 = vld [vmem:[%s251] sm:$0xff]
      %v277 = vld [vmem:[%s251 + $0x8] sm:$0xff]
      %v278 = vld [vmem:[%s2] sm:$0xff]
      %v279 = vld [vmem:[%s2 + $0x8] sm:$0xff]
      %281 = vset.pattern.permute.xlu0 0
      %282 = vperm.xlu0 %281, %v278
      %v283 = vpop.permute.xlu0 %282
      %286 = vset.pattern.permute.xlu0 0
      %287 = vperm.xlu0 %286, %v279
      %v288 = vpop.permute.xlu0 %287
      %v292 = vunpack.c.l.b16 %v274
      %v293 = vunpack.c.l.b16 %v275
      %v294 = vpack.c.b16 %v293, %v292
      %v297 = vunpack.c.l.b16 %v276
      %v298 = vunpack.c.h.b16 %v276
      %v299 = vunpack.c.l.b16 %v277
      %v300 = vunpack.c.h.b16 %v277
      %v301 = vpack.c.b16 %v299, %v297
      %v302 = vpack.c.b16 %v300, %v298
      %vm305 = vcmask 130048
      %v307 = vsel %vm305, %v294, 0
      %309 = vmatprep.subr.bf16.mxu0 %v302
      %310 = vmatpush1.bf16.msra.mxu0 %v301
      %311 = vmatprep.subr.bf16.mxu0 0
      %312 = vmatpush1.bf16.msra.mxu0 0
      %313 = vmatprep.subr.bf16.mxu0 0
      %314 = vmatpush1.bf16.msra.mxu0 0
      %315 = vmatprep.subr.bf16.mxu0 0
      %316 = vmatpush1.bf16.msra.mxu0 0
      %317 = vmatprep.subr.bf16.mxu0 0
      %318 = vmatpush1.bf16.msra.mxu0 0
      %319 = vmatprep.subr.bf16.mxu0 0
      %320 = vmatpush1.bf16.msra.mxu0 0
      %321 = vmatprep.subr.bf16.mxu0 0
      %322 = vmatpush1.bf16.msra.mxu0 0
      %323 = vmatprep.subr.bf16.mxu0 0
      %324 = vmatpush1.bf16.msra.mxu0 0
      %325 = vmatprep.subr.bf16.mxu0 0
      %326 = vmatpush1.bf16.msra.mxu0 0
      %327 = vmatprep.subr.bf16.mxu0 0
      %328 = vmatpush1.bf16.msra.mxu0 0
      %329 = vmatprep.subr.bf16.mxu0 0
      %330 = vmatpush1.bf16.msra.mxu0 0
      %331 = vmatprep.subr.bf16.mxu0 0
      %332 = vmatpush1.bf16.msra.mxu0 0
      %333 = vmatprep.subr.bf16.mxu0 0
      %334 = vmatpush1.bf16.msra.mxu0 0
      %335 = vmatprep.subr.bf16.mxu0 0
      %336 = vmatpush1.bf16.msra.mxu0 0
      %337 = vmatprep.subr.bf16.mxu0 0
      %338 = vmatpush1.bf16.msra.mxu0 0
      %339 = vmatprep.subr.bf16.mxu0 0
      %340 = vmatpush1.bf16.msra.mxu0 0
      %341 = vmatprep.mubr.bf16.mxu0 0
      %342 = vmatmul.mubr.bf16.gmra.mrb[0].mxu0 %v307
      %v343 = vpop.f32.mrb[0].mxu0
      %v344 = vadd.f32 %v283, %v343
      %v345 = vpop.f32.mrb[0].mxu0
      %v346 = vadd.f32 %v283, %v345
      %v347 = vpop.f32.mrb[0].mxu0
      %v348 = vadd.f32 %v288, %v347
      %v349 = vpop.f32.mrb[0].mxu0
      %v350 = vadd.f32 %v288, %v349
      %351 = vdwg.mxu0
      %v352 = vld [vmem:[%s261] sm:$0xff]
      %v353 = vld [vmem:[%s261 + $0x8] sm:$0xff]
      %v354 = vunpack.c.l.bf16 %v352
      %v355 = vunpack.c.h.bf16 %v352
      %v356 = vunpack.c.l.bf16 %v353
      %v357 = vunpack.c.h.bf16 %v353
      %v358 = vadd.f32 %v344, %v354
      %v359 = vadd.f32 %v346, %v355
      %v360 = vadd.f32 %v348, %v356
      %v361 = vadd.f32 %v350, %v357
      %v362 = vmax.f32 %v358, 0.0
      %v363 = vmax.f32 %v359, 0.0
      %v364 = vmax.f32 %v360, 0.0
      %v365 = vmax.f32 %v361, 0.0
      %v366 = vpack.c.bf16 %v364, %v362
      %v367 = vpack.c.bf16 %v365, %v363
      %v370 = vunpack.c.l.b16 %v366
      %v371 = vunpack.c.l.b16 %v367
      %v372 = vunpack.c.h.b16 %v366
      %v373 = vunpack.c.h.b16 %v367
      %v374 = vpack.c.b16 %v371, %v370
      %v375 = vpack.c.b16 %v373, %v372
      %378 = vst [vmem:[%s271] sm:$0xff] %v374
      %379 = vst [vmem:[%s271 + $0x8] sm:$0xff] %v375
      %s380 = smul.u32 2, %s20
      %p381 = scmp.lt.s32.totalorder %s19, 1
      %s382 = scalar_select %p381, %s19, 1
      %p383 = scmp.lt.s32.totalorder %s380, 1
      %s384 = scalar_select %p383, %s380, 1
      %s385 = smul.addr %s382, 4
      %s386 = sadd.s32 %s384, %s385
      %s387 = smul.addr %s386, 4
      %s388 = scalar_lea.vmem %s4, %s387
      // Predicated region
      $region37: #{fno_forward.7} parent=35 // pred_check
        %p389 = pneg %p145
      $region38: #{fno_forward.7} parent=35 // pred_check_branch
        %391 = sbr.rel (%p389) target = $region40
      $region39: #{fno_forward.7} parent=35 // pred_region
        %s392 = smul.u32 2, %s20
      $region40: #{fno_forward.7} parent=35 // pred_fallthru
        _
    $region36: #{fno_forward.7} parent=5 // pred_fallthru
      _
    %p393 = scmp.le.s32.totalorder 2, %s10
    // Predicated region
    $region41: #{fno_forward.7} parent=5 // pred_check
      %p394 = pneg %p393
    $region42: #{fno_forward.7} parent=5 // pred_check_branch
      %396 = sbr.rel (%p394) target = $region44
    $region43: #{fno_forward.7} parent=5 // pred_region
      %s397 = ssub.s32 %s10, 2
      // Predicated region
      $region45: #{fno_forward.7} parent=43 // pred_check
        %p398 = pneg %p151
      $region46: #{fno_forward.7} parent=43 // pred_check_branch
        %400 = sbr.rel (%p398) target = $region48
      $region47: #{fno_forward.7} parent=43 // pred_region
        %s401 = smul.u32 2, %s22
        %p402 = scmp.lt.s32.totalorder %s21, 1
        %s403 = scalar_select %p402, %s21, 1
        %p404 = scmp.lt.s32.totalorder %s401, 1
        %s405 = scalar_select %p404, %s401, 1
        %s406 = smul.addr %s403, 4
        %s407 = sadd.s32 %s405, %s406
        %s408 = smul.addr %s407, 4
        %s409 = scalar_lea.vmem %s4, %s408
      $region48: #{fno_forward.7} parent=43 // pred_fallthru
        _
    $region44: #{fno_forward.7} parent=5 // pred_fallthru
      _
  $region6: #{fno_forward.7} parent=0 // loop_footer
    %s14 = sadd.s32 1, %s10
  $region7: #{fno_forward.7} parent=0 // loop_footer_branch
    %9 = sbr.rel target = $region3
  $region8: #{fno_forward.7} parent=0 // loop_exit
    _

// kernel: fno_forward.10
$region0: #{fno_forward.10}
  #allocation0 [shape = 'u32[]', space=smem, size = 0x4, offset = 0x4, fixed_abs, tag = 'smem constant byte address 0x4 - core index']
  #allocation1 [shape = 'u32[144,128]{1,0:T(1,128)}', space=vmem, size = 0x12000, scoped, tag = 'internal scratch']
  %s0 = inlined_call_operand.vmem [shape: bf16[2,16,256], index: 0, kind: input, shape index: {}]
  %s1 = inlined_call_operand.vmem [shape: bf16[16,16], index: 1, kind: input, shape index: {}]
  %s2 = inlined_call_operand.vmem [shape: f32[16,1], index: 2, kind: input, shape index: {}]
  %s3 = inlined_call_operand.vmem [shape: bf16[2,16,256], index: 3, kind: input, shape index: {}]
  %s4 = inlined_call_operand.vmem [shape: bf16[2,16,256], index: 4, kind: output, shape index: {}]
  %s5 = sld [smem:[#allocation0]]
  $region49: #{fno_forward.10} parent=0
    _
  %s7 = ssub.s32 1, %s5
  %s8 = scalar_select 0, %s7, %s5
  loop: start=0, step=1, limit=4
  $region2: #{fno_forward.10} parent=0 // loop_pre_header
    _
  $region3: #{fno_forward.10} parent=0 // loop_header
    %s10 = sphi 0, %s14
    %p11 = scmp.ge.s32.totalorder %s10, 4
    %s17 = sphi 0, %s29
    %s18 = sphi 0, %s25
    %s19 = sphi 0, %s17
    %s20 = sphi 0, %s18
    %s21 = sphi 0, %s19
    %s22 = sphi 0, %s20
    %s34 = sphi 0, %s36
    %s37 = sphi 0, %s34
    %s38 = sphi 0, %s37
    %s54 = sphi 0, %s38
    %s58 = sphi 0, %s58
    %s60 = sphi 0, %s58
    %s61 = sphi 0, %s60
    %s75 = sphi 0, %s61
    %s79 = sphi 0, %s79
    %s81 = sphi 0, %s79
    %s82 = sphi 0, %s81
    %s96 = sphi 0, %s82
    %s104 = sphi 0, %s106
    %s107 = sphi 0, %s104
    %s108 = sphi 0, %s107
    %s124 = sphi 0, %s108
    %s132 = sphi 0, %s134
    %s135 = sphi 0, %s132
    %s136 = sphi 0, %s135
    %s152 = sphi 0, %s136
  $region4: #{fno_forward.10} parent=0 // loop_header_branch
    %13 = sbr.rel (%p11) target = $region8
  $region5: #{fno_forward.10} parent=0 // loop_body
    %s15 = ssub.s32 %s10, 1
    %s16 = ssub.s32 %s10, 2
    %s23 = sadd.s32 1, %s18
    %p24 = scmp.ge.s32.totalorder %s23, 1
    %s25 = scalar_select %p24, 0, %s23
    %s26 = sadd.s32 1, %s17
    %s27 = scalar_select %p24, %s26, %s17
    %p28 = scmp.ge.s32.totalorder %s27, 2
    %s29 = scalar_select %p28, 0, %s27
    %s30 = ssub.s32 %s17, %s29
    %s31 = ssub.s32 %s18, %s25
    %s32 = sor.u32 %s30, %s31
    %p33 = scmp.eq.s32.totalorder %s32, 0
    %s35 = sadd.s32 %s34, 1
    %s36 = scalar_select %p33, %s34, %s35
    %p39 = pneg %p33
    %p40 = scmp.eq.s32.totalorder %s10, 1
    %p41 = por %p39, %p40
    %p42 = scmp.ne.s32.totalorder %s34, %s37
    %p43 = scmp.eq.s32.totalorder %s10, 0
    %p44 = por %p42, %p43
    %p45 = scmp.ne.s32.totalorder %s34, %s37
    %p46 = scmp.eq.s32.totalorder %s15, 1
    %p47 = por %p45, %p46
    %p48 = scmp.ne.s32.totalorder %s37, %s38
    %p49 = scmp.eq.s32.totalorder %s15, 0
    %p50 = por %p48, %p49
    %p51 = scmp.ne.s32.totalorder %s37, %s38
    %p52 = scmp.eq.s32.totalorder %s16, 1
    %p53 = por %p51, %p52
    %p55 = scmp.ne.s32.totalorder %s38, %s54
    %p56 = scmp.eq.s32.totalorder %s16, 0
    %p57 = por %p55, %p56
    %s59 = sadd.s32 %s58, 1
    %p62 = scmp.eq.s32.totalorder %s10, 1
    %p63 = scmp.ne.s32.totalorder %s58, %s60
    %p64 = scmp.eq.s32.totalorder %s10, 0
    %p65 = por %p63, %p64
    %p66 = scmp.ne.s32.totalorder %s58, %s60
    %p67 = scmp.eq.s32.totalorder %s15, 1
    %p68 = por %p66, %p67
    %p69 = scmp.ne.s32.totalorder %s60, %s61
    %p70 = scmp.eq.s32.totalorder %s15, 0
    %p71 = por %p69, %p70
    %p72 = scmp.ne.s32.totalorder %s60, %s61
    %p73 = scmp.eq.s32.totalorder %s16, 1
    %p74 = por %p72, %p73
    %p76 = scmp.ne.s32.totalorder %s61, %s75
    %p77 = scmp.eq.s32.totalorder %s16, 0
    %p78 = por %p76, %p77
    %s80 = sadd.s32 %s79, 1
    %p83 = scmp.eq.s32.totalorder %s10, 1
    %p84 = scmp.ne.s32.totalorder %s79, %s81
    %p85 = scmp.eq.s32.totalorder %s10, 0
    %p86 = por %p84, %p85
    %p87 = scmp.ne.s32.totalorder %s79, %s81
    %p88 = scmp.eq.s32.totalorder %s15, 1
    %p89 = por %p87, %p88
    %p90 = scmp.ne.s32.totalorder %s81, %s82
    %p91 = scmp.eq.s32.totalorder %s15, 0
    %p92 = por %p90, %p91
    %p93 = scmp.ne.s32.totalorder %s81, %s82
    %p94 = scmp.eq.s32.totalorder %s16, 1
    %p95 = por %p93, %p94
    %p97 = scmp.ne.s32.totalorder %s82, %s96
    %p98 = scmp.eq.s32.totalorder %s16, 0
    %p99 = por %p97, %p98
    %s100 = ssub.s32 %s17, %s29
    %s101 = ssub.s32 %s18, %s25
    %s102 = sor.u32 %s100, %s101
    %p103 = scmp.eq.s32.totalorder %s102, 0
    %s105 = sadd.s32 %s104, 1
    %s106 = scalar_select %p103, %s104, %s105
    %p109 = pneg %p103
    %p110 = scmp.eq.s32.totalorder %s10, 1
    %p111 = por %p109, %p110
    %p112 = scmp.ne.s32.totalorder %s104, %s107
    %p113 = scmp.eq.s32.totalorder %s10, 0
    %p114 = por %p112, %p113
    %p115 = scmp.ne.s32.totalorder %s104, %s107
    %p116 = scmp.eq.s32.totalorder %s15, 1
    %p117 = por %p115, %p116
    %p118 = scmp.ne.s32.totalorder %s107, %s108
    %p119 = scmp.eq.s32.totalorder %s15, 0
    %p120 = por %p118, %p119
    %p121 = scmp.ne.s32.totalorder %s107, %s108
    %p122 = scmp.eq.s32.totalorder %s16, 1
    %p123 = por %p121, %p122
    %p125 = scmp.ne.s32.totalorder %s108, %s124
    %p126 = scmp.eq.s32.totalorder %s16, 0
    %p127 = por %p125, %p126
    %s128 = ssub.s32 %s17, %s29
    %s129 = ssub.s32 %s18, %s25
    %s130 = sor.u32 %s128, %s129
    %p131 = scmp.eq.s32.totalorder %s130, 0
    %s133 = sadd.s32 %s132, 1
    %s134 = scalar_select %p131, %s132, %s133
    %p137 = pneg %p131
    %p138 = scmp.eq.s32.totalorder %s10, 1
    %p139 = por %p137, %p138
    %p140 = scmp.ne.s32.totalorder %s132, %s135
    %p141 = scmp.eq.s32.totalorder %s10, 0
    %p142 = por %p140, %p141
    %p143 = scmp.ne.s32.totalorder %s132, %s135
    %p144 = scmp.eq.s32.totalorder %s15, 1
    %p145 = por %p143, %p144
    %p146 = scmp.ne.s32.totalorder %s135, %s136
    %p147 = scmp.eq.s32.totalorder %s15, 0
    %p148 = por %p146, %p147
    %p149 = scmp.ne.s32.totalorder %s135, %s136
    %p150 = scmp.eq.s32.totalorder %s16, 1
    %p151 = por %p149, %p150
    %p153 = scmp.ne.s32.totalorder %s136, %s152
    %p154 = scmp.eq.s32.totalorder %s16, 0
    %p155 = por %p153, %p154
    %p156 = scmp.le.s32.totalorder 1, %s10
    %p157 = scmp.lt.s32.totalorder %s10, 3
    %p158 = pnand %p156, %p157
    %p159 = pneg %p158
    // Predicated region
    $region9: #{fno_forward.10} parent=5 // pred_check
      _
    $region10: #{fno_forward.10} parent=5 // pred_check_branch
      %161 = sbr.rel (%p158) target = $region12
    $region11: #{fno_forward.10} parent=5 // pred_region
      %s162 = ssub.s32 %s10, 1
      // Predicated region
      $region13: #{fno_forward.10} parent=11 // pred_check
        %p163 = pneg %p71
      $region14: #{fno_forward.10} parent=11 // pred_check_branch
        %165 = sbr.rel (%p163) target = $region16
      $region15: #{fno_forward.10} parent=11 // pred_region
        _
      $region16: #{fno_forward.10} parent=11 // pred_fallthru
        _
      // Predicated region
      $region17: #{fno_forward.10} parent=11 // pred_check
        %p166 = pneg %p92
      $region18: #{fno_forward.10} parent=11 // pred_check_branch
        %168 = sbr.rel (%p166) target = $region20
      $region19: #{fno_forward.10} parent=11 // pred_region
        _
      $region20: #{fno_forward.10} parent=11 // pred_fallthru
        _
    $region12: #{fno_forward.10} parent=5 // pred_fallthru
      _
    %p169 = scmp.lt.s32.totalorder %s10, 2
    // Predicated region
    $region21: #{fno_forward.10} parent=5 // pred_check
      %p170 = pneg %p169
    $region22: #{fno_forward.10} parent=5 // pred_check_branch
      %172 = sbr.rel (%p170) target = $region24
    $region23: #{fno_forward.10} parent=5 // pred_region
      // Predicated region
      $region25: #{fno_forward.10} parent=23 // pred_check
        %p173 = pneg %p44
      $region26: #{fno_forward.10} parent=23 // pred_check_branch
        %175 = sbr.rel (%p173) target = $region28
      $region27: #{fno_forward.10} parent=23 // pred_region
        %s176 = smul.u32 2, %s18
        %p177 = scmp.lt.s32.totalorder %s17, 1
        %s178 = scalar_select %p177, %s17, 1
        %p179 = scmp.lt.s32.totalorder %s176, 1
        %s180 = scalar_select %p179, %s176, 1
        %s181 = smul.addr %s178, 4
        %s182 = sadd.s32 %s180, %s181
        %s183 = smul.addr %s182, 4
        %s184 = scalar_lea.vmem %s0, %s183
        %s185 = smul.u32 2, %s18
      $region28: #{fno_forward.10} parent=23 // pred_fallthru
        _
      // Predicated region
      $region29: #{fno_forward.10} parent=23 // pred_check
        %p186 = pneg %p114
      $region30: #{fno_forward.10} parent=23 // pred_check_branch
        %188 = sbr.rel (%p186) target = $region32
      $region31: #{fno_forward.10} parent=23 // pred_region
        %s189 = smul.u32 2, %s18
        %p190 = scmp.lt.s32.totalorder %s17, 1
        %s191 = scalar_select %p190, %s17, 1
        %p192 = scmp.lt.s32.totalorder %s189, 1
        %s193 = scalar_select %p192, %s189, 1
        %s194 = smul.addr %s191, 4
        %s195 = sadd.s32 %s193, %s194
        %s196 = smul.addr %s195, 4
        %s197 = scalar_lea.vmem %s3, %s196
        %s198 = smul.u32 2, %s18
      $region32: #{fno_forward.10} parent=23 // pred_fallthru
        _
    $region24: #{fno_forward.10} parent=5 // pred_fallthru
      _
    %p199 = scmp.le.s32.totalorder 1, %s10
    %p200 = scmp.lt.s32.totalorder %s10, 3
    %p201 = pnand %p199, %p200
    %p202 = pneg %p201
    // Predicated region
    $region33: #{fno_forward.10} parent=5 // pred_check
      _
    $region34: #{fno_forward.10} parent=5 // pred_check_branch
      %204 = sbr.rel (%p201) target = $region36
    $region35: #{fno_forward.10} parent=5 // pred_region
      %s205 = ssub.s32 %s10, 1
      %s206 = smul.u32 2, %s20
      %p207 = scmp.lt.s32.totalorder %s19, 1
      %s208 = scalar_select %p207, %s19, 1
      %p209 = scmp.lt.s32.totalorder %s206, 1
      %s210 = scalar_select %p209, %s206, 1
      %s211 = smul.addr %s208, 4
      %s212 = sadd.s32 %s210, %s211
      %s213 = smul.addr %s212, 4
      %s214 = scalar_lea.vmem %s0, %s213
      %p215 = pneg %p50
      %p216 = pneg %p47
      %p217 = pneg %p71
      %p218 = pneg %p68
      %p219 = pneg %p92
      %p220 = pneg %p89
      %s221 = smul.u32 2, %s20
      %p222 = scmp.lt.s32.totalorder %s19, 1
      %s223 = scalar_select %p222, %s19, 1
      %p224 = scmp.lt.s32.totalorder %s221, 1
      %s225 = scalar_select %p224, %s221, 1
      %s226 = smul.addr %s223, 4
      %s227 = sadd.s32 %s225, %s226
      %s228 = smul.addr %s227, 4
      %s229 = scalar_lea.vmem %s3, %s228
      %p230 = pneg %p120
      %p231 = pneg %p117
      %p232 = pneg %p148
      %p233 = pneg %p145
      %s234 = smul.u32 2, %s20
      %p235 = scmp.lt.s32.totalorder %s19, 1
      %s236 = scalar_select %p235, %s19, 1
      %p237 = scmp.lt.s32.totalorder %s234, 1
      %s238 = scalar_select %p237, %s234, 1
      %s239 = smul.addr %s236, 4
      %s240 = sadd.s32 %s238, %s239
      %s241 = smul.addr %s240, 4
      %s242 = scalar_lea.vmem %s4, %s241
      %s243 = smul.u32 2, %s20
      %p244 = scmp.lt.s32.totalorder %s19, 1
      %s245 = scalar_select %p244, %s19, 1
      %p246 = scmp.lt.s32.totalorder %s243, 1
      %s247 = scalar_select %p246, %s243, 1
      %s248 = smul.addr %s245, 4
      %s249 = sadd.s32 %s247, %s248
      %s250 = smul.addr %s249, 4
      %s251 = scalar_lea.vmem %s0, %s250
      %s252 = smul.u32 2, %s20
      %s253 = smul.u32 2, %s20
      %p254 = scmp.lt.s32.totalorder %s19, 1
      %s255 = scalar_select %p254, %s19, 1
      %p256 = scmp.lt.s32.totalorder %s253, 1
      %s257 = scalar_select %p256, %s253, 1
      %s258 = smul.addr %s255, 4
      %s259 = sadd.s32 %s257, %s258
      %s260 = smul.addr %s259, 4
      %s261 = scalar_lea.vmem %s3, %s260
      %s262 = smul.u32 2, %s20
      %s263 = smul.u32 2, %s20
      %p264 = scmp.lt.s32.totalorder %s19, 1
      %s265 = scalar_select %p264, %s19, 1
      %p266 = scmp.lt.s32.totalorder %s263, 1
      %s267 = scalar_select %p266, %s263, 1
      %s268 = smul.addr %s265, 4
      %s269 = sadd.s32 %s267, %s268
      %s270 = smul.addr %s269, 4
      %s271 = scalar_lea.vmem %s4, %s270
      %s272 = smul.u32 2, %s20
      %v274 = vld [vmem:[%s1] sm:$0xf]
      %v275 = vld [vmem:[%s1 + $0x4] sm:$0xf]
      %v276 = vld [vmem:[%s251] sm:$0xff]
      %v277 = vld [vmem:[%s251 + $0x8] sm:$0xff]
      %v278 = vld [vmem:[%s2] sm:$0xff]
      %v279 = vld [vmem:[%s2 + $0x8] sm:$0xff]
      %281 = vset.pattern.permute.xlu0 0
      %282 = vperm.xlu0 %281, %v278
      %v283 = vpop.permute.xlu0 %282
      %286 = vset.pattern.permute.xlu0 0
      %287 = vperm.xlu0 %286, %v279
      %v288 = vpop.permute.xlu0 %287
      %v292 = vunpack.c.l.b16 %v274
      %v293 = vunpack.c.l.b16 %v275
      %v294 = vpack.c.b16 %v293, %v292
      %v297 = vunpack.c.l.b16 %v276
      %v298 = vunpack.c.h.b16 %v276
      %v299 = vunpack.c.l.b16 %v277
      %v300 = vunpack.c.h.b16 %v277
      %v301 = vpack.c.b16 %v299, %v297
      %v302 = vpack.c.b16 %v300, %v298
      %vm305 = vcmask 130048
      %v307 = vsel %vm305, %v294, 0
      %309 = vmatprep.subr.bf16.mxu0 %v302
      %310 = vmatpush1.bf16.msra.mxu0 %v301
      %311 = vmatprep.subr.bf16.mxu0 0
      %312 = vmatpush1.bf16.msra.mxu0 0
      %313 = vmatprep.subr.bf16.mxu0 0
      %314 = vmatpush1.bf16.msra.mxu0 0
      %315 = vmatprep.subr.bf16.mxu0 0
      %316 = vmatpush1.bf16.msra.mxu0 0
      %317 = vmatprep.subr.bf16.mxu0 0
      %318 = vmatpush1.bf16.msra.mxu0 0
      %319 = vmatprep.subr.bf16.mxu0 0
      %320 = vmatpush1.bf16.msra.mxu0 0
      %321 = vmatprep.subr.bf16.mxu0 0
      %322 = vmatpush1.bf16.msra.mxu0 0
      %323 = vmatprep.subr.bf16.mxu0 0
      %324 = vmatpush1.bf16.msra.mxu0 0
      %325 = vmatprep.subr.bf16.mxu0 0
      %326 = vmatpush1.bf16.msra.mxu0 0
      %327 = vmatprep.subr.bf16.mxu0 0
      %328 = vmatpush1.bf16.msra.mxu0 0
      %329 = vmatprep.subr.bf16.mxu0 0
      %330 = vmatpush1.bf16.msra.mxu0 0
      %331 = vmatprep.subr.bf16.mxu0 0
      %332 = vmatpush1.bf16.msra.mxu0 0
      %333 = vmatprep.subr.bf16.mxu0 0
      %334 = vmatpush1.bf16.msra.mxu0 0
      %335 = vmatprep.subr.bf16.mxu0 0
      %336 = vmatpush1.bf16.msra.mxu0 0
      %337 = vmatprep.subr.bf16.mxu0 0
      %338 = vmatpush1.bf16.msra.mxu0 0
      %339 = vmatprep.subr.bf16.mxu0 0
      %340 = vmatpush1.bf16.msra.mxu0 0
      %341 = vmatprep.mubr.bf16.mxu0 0
      %342 = vmatmul.mubr.bf16.gmra.mrb[0].mxu0 %v307
      %v343 = vpop.f32.mrb[0].mxu0
      %v344 = vadd.f32 %v283, %v343
      %v345 = vpop.f32.mrb[0].mxu0
      %v346 = vadd.f32 %v283, %v345
      %v347 = vpop.f32.mrb[0].mxu0
      %v348 = vadd.f32 %v288, %v347
      %v349 = vpop.f32.mrb[0].mxu0
      %v350 = vadd.f32 %v288, %v349
      %351 = vdwg.mxu0
      %v352 = vld [vmem:[%s261] sm:$0xff]
      %v353 = vld [vmem:[%s261 + $0x8] sm:$0xff]
      %v354 = vunpack.c.l.bf16 %v352
      %v355 = vunpack.c.h.bf16 %v352
      %v356 = vunpack.c.l.bf16 %v353
      %v357 = vunpack.c.h.bf16 %v353
      %v358 = vadd.f32 %v344, %v354
      %v359 = vadd.f32 %v346, %v355
      %v360 = vadd.f32 %v348, %v356
      %v361 = vadd.f32 %v350, %v357
      %v362 = vpack.c.bf16 %v360, %v358
      %v363 = vpack.c.bf16 %v361, %v359
      %v366 = vunpack.c.l.b16 %v362
      %v367 = vunpack.c.l.b16 %v363
      %v368 = vunpack.c.h.b16 %v362
      %v369 = vunpack.c.h.b16 %v363
      %v370 = vpack.c.b16 %v367, %v366
      %v371 = vpack.c.b16 %v369, %v368
      %374 = vst [vmem:[%s271] sm:$0xff] %v370
      %375 = vst [vmem:[%s271 + $0x8] sm:$0xff] %v371
      %s376 = smul.u32 2, %s20
      %p377 = scmp.lt.s32.totalorder %s19, 1
      %s378 = scalar_select %p377, %s19, 1
      %p379 = scmp.lt.s32.totalorder %s376, 1
      %s380 = scalar_select %p379, %s376, 1
      %s381 = smul.addr %s378, 4
      %s382 = sadd.s32 %s380, %s381
      %s383 = smul.addr %s382, 4
      %s384 = scalar_lea.vmem %s4, %s383
      // Predicated region
      $region37: #{fno_forward.10} parent=35 // pred_check
        %p385 = pneg %p145
      $region38: #{fno_forward.10} parent=35 // pred_check_branch
        %387 = sbr.rel (%p385) target = $region40
      $region39: #{fno_forward.10} parent=35 // pred_region
        %s388 = smul.u32 2, %s20
      $region40: #{fno_forward.10} parent=35 // pred_fallthru
        _
    $region36: #{fno_forward.10} parent=5 // pred_fallthru
      _
    %p389 = scmp.le.s32.totalorder 2, %s10
    // Predicated region
    $region41: #{fno_forward.10} parent=5 // pred_check
      %p390 = pneg %p389
    $region42: #{fno_forward.10} parent=5 // pred_check_branch
      %392 = sbr.rel (%p390) target = $region44
    $region43: #{fno_forward.10} parent=5 // pred_region
      %s393 = ssub.s32 %s10, 2
      // Predicated region
      $region45: #{fno_forward.10} parent=43 // pred_check
        %p394 = pneg %p151
      $region46: #{fno_forward.10} parent=43 // pred_check_branch
        %396 = sbr.rel (%p394) target = $region48
      $region47: #{fno_forward.10} parent=43 // pred_region
        %s397 = smul.u32 2, %s22
        %p398 = scmp.lt.s32.totalorder %s21, 1
        %s399 = scalar_select %p398, %s21, 1
        %p400 = scmp.lt.s32.totalorder %s397, 1
        %s401 = scalar_select %p400, %s397, 1
        %s402 = smul.addr %s399, 4
        %s403 = sadd.s32 %s401, %s402
        %s404 = smul.addr %s403, 4
        %s405 = scalar_lea.vmem %s4, %s404
      $region48: #{fno_forward.10} parent=43 // pred_fallthru
        _
    $region44: #{fno_forward.10} parent=5 // pred_fallthru
      _
  $region6: #{fno_forward.10} parent=0 // loop_footer
    %s14 = sadd.s32 1, %s10
  $region7: #{fno_forward.10} parent=0 // loop_footer_branch
    %9 = sbr.rel target = $region3
  $region8: #{fno_forward.10} parent=0 // loop_exit
    _

// kernel: fno_forward.11
$region0: #{fno_forward.11}
  #allocation0 [shape = 'u32[]', space=smem, size = 0x4, offset = 0x4, fixed_abs, tag = 'smem constant byte address 0x4 - core index']
  #allocation1 [shape = 'u32[144,128]{1,0:T(1,128)}', space=vmem, size = 0x12000, scoped, tag = 'internal scratch']
  %s0 = inlined_call_operand.vmem [shape: bf16[2,16,256], index: 0, kind: input, shape index: {}]
  %s1 = inlined_call_operand.vmem [shape: bf16[32,16], index: 1, kind: input, shape index: {}]
  %s2 = inlined_call_operand.vmem [shape: f32[32,1], index: 2, kind: input, shape index: {}]
  %s3 = inlined_call_operand.vmem [shape: bf16[4,32], index: 3, kind: input, shape index: {}]
  %s4 = inlined_call_operand.vmem [shape: f32[4,1], index: 4, kind: input, shape index: {}]
  %s5 = inlined_call_operand.vmem [shape: f32[2,4,256], index: 5, kind: output, shape index: {}]
  %s6 = sld [smem:[#allocation0]]
  $region53: #{fno_forward.11} parent=0
    _
  %s8 = ssub.s32 1, %s6
  %s9 = scalar_select 0, %s8, %s6
  loop: start=0, step=1, limit=4
  $region2: #{fno_forward.11} parent=0 // loop_pre_header
    _
  $region3: #{fno_forward.11} parent=0 // loop_header
    %s11 = sphi 0, %s15
    %p12 = scmp.ge.s32.totalorder %s11, 4
    %s18 = sphi 0, %s30
    %s19 = sphi 0, %s26
    %s20 = sphi 0, %s18
    %s21 = sphi 0, %s19
    %s22 = sphi 0, %s20
    %s23 = sphi 0, %s21
    %s35 = sphi 0, %s37
    %s38 = sphi 0, %s35
    %s39 = sphi 0, %s38
    %s55 = sphi 0, %s39
    %s59 = sphi 0, %s59
    %s61 = sphi 0, %s59
    %s62 = sphi 0, %s61
    %s76 = sphi 0, %s62
    %s80 = sphi 0, %s80
    %s82 = sphi 0, %s80
    %s83 = sphi 0, %s82
    %s97 = sphi 0, %s83
    %s101 = sphi 0, %s101
    %s103 = sphi 0, %s101
    %s104 = sphi 0, %s103
    %s118 = sphi 0, %s104
    %s122 = sphi 0, %s122
    %s124 = sphi 0, %s122
    %s125 = sphi 0, %s124
    %s139 = sphi 0, %s125
    %s147 = sphi 0, %s149
    %s150 = sphi 0, %s147
    %s151 = sphi 0, %s150
    %s167 = sphi 0, %s151
  $region4: #{fno_forward.11} parent=0 // loop_header_branch
    %14 = sbr.rel (%p12) target = $region8
  $region5: #{fno_forward.11} parent=0 // loop_body
    %s16 = ssub.s32 %s11, 1
    %s17 = ssub.s32 %s11, 2
    %s24 = sadd.s32 1, %s19
    %p25 = scmp.ge.s32.totalorder %s24, 1
    %s26 = scalar_select %p25, 0, %s24
    %s27 = sadd.s32 1, %s18
    %s28 = scalar_select %p25, %s27, %s18
    %p29 = scmp.ge.s32.totalorder %s28, 2
    %s30 = scalar_select %p29, 0, %s28
    %s31 = ssub.s32 %s18, %s30
    %s32 = ssub.s32 %s19, %s26
    %s33 = sor.u32 %s31, %s32
    %p34 = scmp.eq.s32.totalorder %s33, 0
    %s36 = sadd.s32 %s35, 1
    %s37 = scalar_select %p34, %s35, %s36
    %p40 = pneg %p34
    %p41 = scmp.eq.s32.totalorder %s11, 1
    %p42 = por %p40, %p41
    %p43 = scmp.ne.s32.totalorder %s35, %s38
    %p44 = scmp.eq.s32.totalorder %s11, 0
    %p45 = por %p43, %p44
    %p46 = scmp.ne.s32.totalorder %s35, %s38
    %p47 = scmp.eq.s32.totalorder %s16, 1
    %p48 = por %p46, %p47
    %p49 = scmp.ne.s32.totalorder %s38, %s39
    %p50 = scmp.eq.s32.totalorder %s16, 0
    %p51 = por %p49, %p50
    %p52 = scmp.ne.s32.totalorder %s38, %s39
    %p53 = scmp.eq.s32.totalorder %s17, 1
    %p54 = por %p52, %p53
    %p56 = scmp.ne.s32.totalorder %s39, %s55
    %p57 = scmp.eq.s32.totalorder %s17, 0
    %p58 = por %p56, %p57
    %s60 = sadd.s32 %s59, 1
    %p63 = scmp.eq.s32.totalorder %s11, 1
    %p64 = scmp.ne.s32.totalorder %s59, %s61
    %p65 = scmp.eq.s32.totalorder %s11, 0
    %p66 = por %p64, %p65
    %p67 = scmp.ne.s32.totalorder %s59, %s61
    %p68 = scmp.eq.s32.totalorder %s16, 1
    %p69 = por %p67, %p68
    %p70 = scmp.ne.s32.totalorder %s61, %s62
    %p71 = scmp.eq.s32.totalorder %s16, 0
    %p72 = por %p70, %p71
    %p73 = scmp.ne.s32.totalorder %s61, %s62
    %p74 = scmp.eq.s32.totalorder %s17, 1
    %p75 = por %p73, %p74
    %p77 = scmp.ne.s32.totalorder %s62, %s76
    %p78 = scmp.eq.s32.totalorder %s17, 0
    %p79 = por %p77, %p78
    %s81 = sadd.s32 %s80, 1
    %p84 = scmp.eq.s32.totalorder %s11, 1
    %p85 = scmp.ne.s32.totalorder %s80, %s82
    %p86 = scmp.eq.s32.totalorder %s11, 0
    %p87 = por %p85, %p86
    %p88 = scmp.ne.s32.totalorder %s80, %s82
    %p89 = scmp.eq.s32.totalorder %s16, 1
    %p90 = por %p88, %p89
    %p91 = scmp.ne.s32.totalorder %s82, %s83
    %p92 = scmp.eq.s32.totalorder %s16, 0
    %p93 = por %p91, %p92
    %p94 = scmp.ne.s32.totalorder %s82, %s83
    %p95 = scmp.eq.s32.totalorder %s17, 1
    %p96 = por %p94, %p95
    %p98 = scmp.ne.s32.totalorder %s83, %s97
    %p99 = scmp.eq.s32.totalorder %s17, 0
    %p100 = por %p98, %p99
    %s102 = sadd.s32 %s101, 1
    %p105 = scmp.eq.s32.totalorder %s11, 1
    %p106 = scmp.ne.s32.totalorder %s101, %s103
    %p107 = scmp.eq.s32.totalorder %s11, 0
    %p108 = por %p106, %p107
    %p109 = scmp.ne.s32.totalorder %s101, %s103
    %p110 = scmp.eq.s32.totalorder %s16, 1
    %p111 = por %p109, %p110
    %p112 = scmp.ne.s32.totalorder %s103, %s104
    %p113 = scmp.eq.s32.totalorder %s16, 0
    %p114 = por %p112, %p113
    %p115 = scmp.ne.s32.totalorder %s103, %s104
    %p116 = scmp.eq.s32.totalorder %s17, 1
    %p117 = por %p115, %p116
    %p119 = scmp.ne.s32.totalorder %s104, %s118
    %p120 = scmp.eq.s32.totalorder %s17, 0
    %p121 = por %p119, %p120
    %s123 = sadd.s32 %s122, 1
    %p126 = scmp.eq.s32.totalorder %s11, 1
    %p127 = scmp.ne.s32.totalorder %s122, %s124
    %p128 = scmp.eq.s32.totalorder %s11, 0
    %p129 = por %p127, %p128
    %p130 = scmp.ne.s32.totalorder %s122, %s124
    %p131 = scmp.eq.s32.totalorder %s16, 1
    %p132 = por %p130, %p131
    %p133 = scmp.ne.s32.totalorder %s124, %s125
    %p134 = scmp.eq.s32.totalorder %s16, 0
    %p135 = por %p133, %p134
    %p136 = scmp.ne.s32.totalorder %s124, %s125
    %p137 = scmp.eq.s32.totalorder %s17, 1
    %p138 = por %p136, %p137
    %p140 = scmp.ne.s32.totalorder %s125, %s139
    %p141 = scmp.eq.s32.totalorder %s17, 0
    %p142 = por %p140, %p141
    %s143 = ssub.s32 %s18, %s30
    %s144 = ssub.s32 %s19, %s26
    %s145 = sor.u32 %s143, %s144
    %p146 = scmp.eq.s32.totalorder %s145, 0
    %s148 = sadd.s32 %s147, 1
    %s149 = scalar_select %p146, %s147, %s148
    %p152 = pneg %p146
    %p153 = scmp.eq.s32.totalorder %s11, 1
    %p154 = por %p152, %p153
    %p155 = scmp.ne.s32.totalorder %s147, %s150
    %p156 = scmp.eq.s32.totalorder %s11, 0
    %p157 = por %p155, %p156
    %p158 = scmp.ne.s32.totalorder %s147, %s150
    %p159 = scmp.eq.s32.totalorder %s16, 1
    %p160 = por %p158, %p159
    %p161 = scmp.ne.s32.totalorder %s150, %s151
    %p162 = scmp.eq.s32.totalorder %s16, 0
    %p163 = por %p161, %p162
    %p164 = scmp.ne.s32.totalorder %s150, %s151
    %p165 = scmp.eq.s32.totalorder %s17, 1
    %p166 = por %p164, %p165
    %p168 = scmp.ne.s32.totalorder %s151, %s167
    %p169 = scmp.eq.s32.totalorder %s17, 0
    %p170 = por %p168, %p169
    %p171 = scmp.le.s32.totalorder 1, %s11
    %p172 = scmp.lt.s32.totalorder %s11, 3
    %p173 = pnand %p171, %p172
    %p174 = pneg %p173
    // Predicated region
    $region9: #{fno_forward.11} parent=5 // pred_check
      _
    $region10: #{fno_forward.11} parent=5 // pred_check_branch
      %176 = sbr.rel (%p173) target = $region12
    $region11: #{fno_forward.11} parent=5 // pred_region
      %s177 = ssub.s32 %s11, 1
      // Predicated region
      $region13: #{fno_forward.11} parent=11 // pred_check
        %p178 = pneg %p72
      $region14: #{fno_forward.11} parent=11 // pred_check_branch
        %180 = sbr.rel (%p178) target = $region16
      $region15: #{fno_forward.11} parent=11 // pred_region
        _
      $region16: #{fno_forward.11} parent=11 // pred_fallthru
        _
      // Predicated region
      $region17: #{fno_forward.11} parent=11 // pred_check
        %p181 = pneg %p93
      $region18: #{fno_forward.11} parent=11 // pred_check_branch
        %183 = sbr.rel (%p181) target = $region20
      $region19: #{fno_forward.11} parent=11 // pred_region
        _
      $region20: #{fno_forward.11} parent=11 // pred_fallthru
        _
      // Predicated region
      $region21: #{fno_forward.11} parent=11 // pred_check
        %p184 = pneg %p114
      $region22: #{fno_forward.11} parent=11 // pred_check_branch
        %186 = sbr.rel (%p184) target = $region24
      $region23: #{fno_forward.11} parent=11 // pred_region
        _
      $region24: #{fno_forward.11} parent=11 // pred_fallthru
        _
      // Predicated region
      $region25: #{fno_forward.11} parent=11 // pred_check
        %p187 = pneg %p135
      $region26: #{fno_forward.11} parent=11 // pred_check_branch
        %189 = sbr.rel (%p187) target = $region28
      $region27: #{fno_forward.11} parent=11 // pred_region
        _
      $region28: #{fno_forward.11} parent=11 // pred_fallthru
        _
    $region12: #{fno_forward.11} parent=5 // pred_fallthru
      _
    %p190 = scmp.lt.s32.totalorder %s11, 2
    // Predicated region
    $region29: #{fno_forward.11} parent=5 // pred_check
      %p191 = pneg %p190
    $region30: #{fno_forward.11} parent=5 // pred_check_branch
      %193 = sbr.rel (%p191) target = $region32
    $region31: #{fno_forward.11} parent=5 // pred_region
      // Predicated region
      $region33: #{fno_forward.11} parent=31 // pred_check
        %p194 = pneg %p45
      $region34: #{fno_forward.11} parent=31 // pred_check_branch
        %196 = sbr.rel (%p194) target = $region36
      $region35: #{fno_forward.11} parent=31 // pred_region
        %s197 = smul.u32 2, %s19
        %p198 = scmp.lt.s32.totalorder %s18, 1
        %s199 = scalar_select %p198, %s18, 1
        %p200 = scmp.lt.s32.totalorder %s197, 1
        %s201 = scalar_select %p200, %s197, 1
        %s202 = smul.addr %s199, 4
        %s203 = sadd.s32 %s201, %s202
        %s204 = smul.addr %s203, 4
        %s205 = scalar_lea.vmem %s0, %s204
        %s206 = smul.u32 2, %s19
      $region36: #{fno_forward.11} parent=31 // pred_fallthru
        _
    $region32: #{fno_forward.11} parent=5 // pred_fallthru
      _
    %p207 = scmp.le.s32.totalorder 1, %s11
    %p208 = scmp.lt.s32.totalorder %s11, 3
    %p209 = pnand %p207, %p208
    %p210 = pneg %p209
    // Predicated region
    $region37: #{fno_forward.11} parent=5 // pred_check
      _
    $region38: #{fno_forward.11} parent=5 // pred_check_branch
      %212 = sbr.rel (%p209) target = $region40
    $region39: #{fno_forward.11} parent=5 // pred_region
      %s213 = ssub.s32 %s11, 1
      %s214 = smul.u32 2, %s21
      %p215 = scmp.lt.s32.totalorder %s20, 1
      %s216 = scalar_select %p215, %s20, 1
      %p217 = scmp.lt.s32.totalorder %s214, 1
      %s218 = scalar_select %p217, %s214, 1
      %s219 = smul.addr %s216, 4
      %s220 = sadd.s32 %s218, %s219
      %s221 = smul.addr %s220, 4
      %s222 = scalar_lea.vmem %s0, %s221
      %p223 = pneg %p51
      %p224 = pneg %p48
      %p225 = pneg %p72
      %p226 = pneg %p69
      %p227 = pneg %p93
      %p228 = pneg %p90
      %p229 = pneg %p114
      %p230 = pneg %p111
      %p231 = pneg %p135
      %p232 = pneg %p132
      %p233 = pneg %p163
      %p234 = pneg %p160
      %s235 = smul.u32 2, %s21
      %p236 = scmp.lt.s32.totalorder %s20, 1
      %s237 = scalar_select %p236, %s20, 1
      %p238 = scmp.lt.s32.totalorder %s235, 1
      %s239 = scalar_select %p238, %s235, 1
      %s240 = smul.addr %s237, 2
      %s241 = sadd.s32 %s239, %s240
      %s242 = smul.addr %s241, 4
      %s243 = scalar_lea.vmem %s5, %s242
      %s244 = smul.u32 2, %s21
      %p245 = scmp.lt.s32.totalorder %s20, 1
      %s246 = scalar_select %p245, %s20, 1
      %p247 = scmp.lt.s32.totalorder %s244, 1
      %s248 = scalar_select %p247, %s244, 1
      %s249 = smul.addr %s246, 4
      %s250 = sadd.s32 %s248, %s249
      %s251 = smul.addr %s250, 4
      %s252 = scalar_lea.vmem %s0, %s251
      %s253 = smul.u32 2, %s21
      %s254 = smul.u32 2, %s21
      %p255 = scmp.lt.s32.totalorder %s20, 1
      %s256 = scalar_select %p255, %s20, 1
      %p257 = scmp.lt.s32.totalorder %s254, 1
      %s258 = scalar_select %p257, %s254, 1
      %s259 = smul.addr %s256, 2
      %s260 = sadd.s32 %s258, %s259
      %s261 = smul.addr %s260, 4
      %s262 = scalar_lea.vmem %s5, %s261
      %s263 = smul.u32 2, %s21
      %v265 = vld [vmem:[%s1] sm:$0xf]
      %v266 = vld [vmem:[%s1 + $0x4] sm:$0xf]
      %v267 = vld [vmem:[%s1 + $0x8] sm:$0xf]
      %v268 = vld [vmem:[%s1 + $0xc] sm:$0xf]
      %v269 = vld [vmem:[%s252] sm:$0xff]
      %v270 = vld [vmem:[%s252 + $0x8] sm:$0xff]
      %v271 = vld [vmem:[%s2] sm:$0xff]
      %v272 = vld [vmem:[%s2 + $0x8] sm:$0xff]
      %v273 = vld [vmem:[%s2 + $0x10] sm:$0xff]
      %v274 = vld [vmem:[%s2 + $0x18] sm:$0xff]
      %276 = vset.pattern.permute.xlu0 0
      %277 = vperm.xlu0 %276, %v271
      %v278 = vpop.permute.xlu0 %277
      %281 = vset.pattern.permute.xlu0 0
      %282 = vperm.xlu0 %281, %v272
      %v283 = vpop.permute.xlu0 %282
      %286 = vset.pattern.permute.xlu0 0
      %287 = vperm.xlu0 %286, %v273
      %v288 = vpop.permute.xlu0 %287
      %291 = vset.pattern.permute.xlu0 0
      %292 = vperm.xlu0 %291, %v274
      %v293 = vpop.permute.xlu0 %292
      %v299 = vunpack.c.l.b16 %v265
      %v300 = vunpack.c.l.b16 %v266
      %v301 = vunpack.c.l.b16 %v267
      %v302 = vunpack.c.l.b16 %v268
      %v303 = vpack.c.b16 %v300, %v299
      %v304 = vpack.c.b16 %v302, %v301
      %v307 = vunpack.c.l.b16 %v269
      %v308 = vunpack.c.h.b16 %v269
      %v309 = vunpack.c.l.b16 %v270
      %v310 = vunpack.c.h.b16 %v270
      %v311 = vpack.c.b16 %v309, %v307
      %v312 = vpack.c.b16 %v310, %v308
      %vm315 = vcmask 130048
      %v317 = vsel %vm315, %v303, 0
      %v320 = vsel %vm315, %v304, 0
      %322 = vmatprep.subr.bf16.mxu0 %v312
      %323 = vmatpush1.bf16.msra.mxu0 %v311
      %324 = vmatprep.subr.bf16.mxu0 0
      %325 = vmatpush1.bf16.msra.mxu0 0
      %326 = vmatprep.subr.bf16.mxu0 0
      %327 = vmatpush1.bf16.msra.mxu0 0
      %328 = vmatprep.subr.bf16.mxu0 0
      %329 = vmatpush1.bf16.msra.mxu0 0
      %330 = vmatprep.subr.bf16.mxu0 0
      %331 = vmatpush1.bf16.msra.mxu0 0
      %332 = vmatprep.subr.bf16.mxu0 0
      %333 = vmatpush1.bf16.msra.mxu0 0
      %334 = vmatprep.subr.bf16.mxu0 0
      %335 = vmatpush1.bf16.msra.mxu0 0
      %336 = vmatprep.subr.bf16.mxu0 0
      %337 = vmatpush1.bf16.msra.mxu0 0
      %338 = vmatprep.subr.bf16.mxu0 0
      %339 = vmatpush1.bf16.msra.mxu0 0
      %340 = vmatprep.subr.bf16.mxu0 0
      %341 = vmatpush1.bf16.msra.mxu0 0
      %342 = vmatprep.subr.bf16.mxu0 0
      %343 = vmatpush1.bf16.msra.mxu0 0
      %344 = vmatprep.subr.bf16.mxu0 0
      %345 = vmatpush1.bf16.msra.mxu0 0
      %346 = vmatprep.subr.bf16.mxu0 0
      %347 = vmatpush1.bf16.msra.mxu0 0
      %348 = vmatprep.subr.bf16.mxu0 0
      %349 = vmatpush1.bf16.msra.mxu0 0
      %350 = vmatprep.subr.bf16.mxu0 0
      %351 = vmatpush1.bf16.msra.mxu0 0
      %352 = vmatprep.subr.bf16.mxu0 0
      %353 = vmatpush1.bf16.msra.mxu0 0
      %354 = vmatprep.mubr.bf16.mxu0 0
      %355 = vmatmul.mubr.bf16.gmra.mrb[0].mxu0 %v317
      %v356 = vpop.f32.mrb[0].mxu0
      %v357 = vadd.f32 %v278, %v356
      %v358 = vpop.f32.mrb[0].mxu0
      %v359 = vadd.f32 %v278, %v358
      %v360 = vpop.f32.mrb[0].mxu0
      %v361 = vadd.f32 %v283, %v360
      %v362 = vpop.f32.mrb[0].mxu0
      %v363 = vadd.f32 %v283, %v362
      %364 = vmatprep.mubr.bf16.mxu0 0
      %365 = vmatmul.mubr.bf16.gmra.mrb[0].mxu0 %v320
      %v366 = vpop.f32.mrb[0].mxu0
      %v367 = vadd.f32 %v288, %v366
      %v368 = vpop.f32.mrb[0].mxu0
      %v369 = vadd.f32 %v288, %v368
      %v370 = vpop.f32.mrb[0].mxu0
      %v371 = vadd.f32 %v293, %v370
      %v372 = vpop.f32.mrb[0].mxu0
      %v373 = vadd.f32 %v293, %v372
      %374 = vdwg.mxu0
      %v375 = vmax.f32 %v357, 0.0
      %v376 = vmax.f32 %v359, 0.0
      %v377 = vmax.f32 %v361, 0.0
      %v378 = vmax.f32 %v363, 0.0
      %v379 = vmax.f32 %v367, 0.0
      %v380 = vmax.f32 %v369, 0.0
      %v381 = vmax.f32 %v371, 0.0
      %v382 = vmax.f32 %v373, 0.0
      %v383 = vld [vmem:[%s3] sm:$0x3]
      %v384 = vpack.c.bf16 %v377, %v375
      %v385 = vpack.c.bf16 %v378, %v376
      %v386 = vpack.c.bf16 %v381, %v379
      %v387 = vpack.c.bf16 %v382, %v380
      %v388 = vld [vmem:[%s4] sm:$0xf]
      %390 = vset.pattern.permute.xlu0 0
      %391 = vperm.xlu0 %390, %v388
      %v392 = vpop.permute.xlu0 %391
      %vm394 = vcmask 261120
      %v396 = vsel %vm394, %v383, 0
      %398 = vmatprep.subr.bf16.mxu0 %v385
      %399 = vmatpush1.bf16.msra.mxu0 %v384
      %400 = vmatprep.subr.bf16.mxu0 %v387
      %401 = vmatpush1.bf16.msra.mxu0 %v386
      %402 = vmatprep.subr.bf16.mxu0 0
      %403 = vmatpush1.bf16.msra.mxu0 0
      %404 = vmatprep.subr.bf16.mxu0 0
      %405 = vmatpush1.bf16.msra.mxu0 0
      %406 = vmatprep.subr.bf16.mxu0 0
      %407 = vmatpush1.bf16.msra.mxu0 0
      %408 = vmatprep.subr.bf16.mxu0 0
      %409 = vmatpush1.bf16.msra.mxu0 0
      %410 = vmatprep.subr.bf16.mxu0 0
      %411 = vmatpush1.bf16.msra.mxu0 0
      %412 = vmatprep.subr.bf16.mxu0 0
      %413 = vmatpush1.bf16.msra.mxu0 0
      %414 = vmatprep.subr.bf16.mxu0 0
      %415 = vmatpush1.bf16.msra.mxu0 0
      %416 = vmatprep.subr.bf16.mxu0 0
      %417 = vmatpush1.bf16.msra.mxu0 0
      %418 = vmatprep.subr.bf16.mxu0 0
      %419 = vmatpush1.bf16.msra.mxu0 0
      %420 = vmatprep.subr.bf16.mxu0 0
      %421 = vmatpush1.bf16.msra.mxu0 0
      %422 = vmatprep.subr.bf16.mxu0 0
      %423 = vmatpush1.bf16.msra.mxu0 0
      %424 = vmatprep.subr.bf16.mxu0 0
      %425 = vmatpush1.bf16.msra.mxu0 0
      %426 = vmatprep.subr.bf16.mxu0 0
      %427 = vmatpush1.bf16.msra.mxu0 0
      %428 = vmatprep.subr.bf16.mxu0 0
      %429 = vmatpush1.bf16.msra.mxu0 0
      %430 = vmatprep.mubr.bf16.mxu0 0
      %431 = vmatmul.mubr.bf16.gmra.mrb[0].mxu0 %v396
      %v432 = vpop.f32.mrb[0].mxu0
      %v433 = vadd.f32 %v392, %v432
      %v434 = vpop.f32.mrb[0].mxu0
      %v435 = vadd.f32 %v392, %v434
      %v436 = vpop.f32.mrb[0].mxu0
      %v437 = vpop.f32.mrb[0].mxu0
      %438 = vdwg.mxu0
      %v441 = vcombine.low %v433, %v435
      %443 = vst [vmem:[%s262] sm:$0xff] %v441
      %s444 = smul.u32 2, %s21
      %p445 = scmp.lt.s32.totalorder %s20, 1
      %s446 = scalar_select %p445, %s20, 1
      %p447 = scmp.lt.s32.totalorder %s444, 1
      %s448 = scalar_select %p447, %s444, 1
      %s449 = smul.addr %s446, 2
      %s450 = sadd.s32 %s448, %s449
      %s451 = smul.addr %s450, 4
      %s452 = scalar_lea.vmem %s5, %s451
      // Predicated region
      $region41: #{fno_forward.11} parent=39 // pred_check
        %p453 = pneg %p160
      $region42: #{fno_forward.11} parent=39 // pred_check_branch
        %455 = sbr.rel (%p453) target = $region44
      $region43: #{fno_forward.11} parent=39 // pred_region
        %s456 = smul.u32 2, %s21
      $region44: #{fno_forward.11} parent=39 // pred_fallthru
        _
    $region40: #{fno_forward.11} parent=5 // pred_fallthru
      _
    %p457 = scmp.le.s32.totalorder 2, %s11
    // Predicated region
    $region45: #{fno_forward.11} parent=5 // pred_check
      %p458 = pneg %p457
    $region46: #{fno_forward.11} parent=5 // pred_check_branch
      %460 = sbr.rel (%p458) target = $region48
    $region47: #{fno_forward.11} parent=5 // pred_region
      %s461 = ssub.s32 %s11, 2
      // Predicated region
      $region49: #{fno_forward.11} parent=47 // pred_check
        %p462 = pneg %p166
      $region50: #{fno_forward.11} parent=47 // pred_check_branch
        %464 = sbr.rel (%p462) target = $region52
      $region51: #{fno_forward.11} parent=47 // pred_region
        %s465 = smul.u32 2, %s23
        %p466 = scmp.lt.s32.totalorder %s22, 1
        %s467 = scalar_select %p466, %s22, 1
        %p468 = scmp.lt.s32.totalorder %s465, 1
        %s469 = scalar_select %p468, %s465, 1
        %s470 = smul.addr %s467, 2
        %s471 = sadd.s32 %s469, %s470
        %s472 = smul.addr %s471, 4
        %s473 = scalar_lea.vmem %s5, %s472
      $region52: #{fno_forward.11} parent=47 // pred_fallthru
        _
    $region48: #{fno_forward.11} parent=5 // pred_fallthru
      _
  $region6: #{fno_forward.11} parent=0 // loop_footer
    %s15 = sadd.s32 1, %s11
  $region7: #{fno_forward.11} parent=0 // loop_footer_branch
    %10 = sbr.rel target = $region3
  $region8: #{fno_forward.11} parent=0 // loop_exit
    _

</llo_original>
